<compile_context>
chip_gen: v5e
topology: v5e:2x2
jax: 0.10.0
libtpu: 0.0.40
codegen_flags: <defaults>
</compile_context>

<pallas_src>
import functools

import jax
import jax.numpy as jnp
from jax import lax
from jax.experimental import pallas as pl
from jax.experimental.pallas import tpu as pltpu

LANE = 128


def _round_up(x, m):
    return ((x + m - 1) // m) * m


def _bytes(dt):
    return jnp.dtype(dt).itemsize


def _is_bf16(dt):
    return jnp.dtype(dt) == jnp.dtype(jnp.bfloat16)


def _vmem_capacity():
    try:
        info = pltpu.get_tpu_info()
        cap = getattr(info, "vmem_capacity_bytes", None)
        if cap:
            return int(cap)
    except Exception:
        pass
    return 64 * 1024 * 1024  # conservative default (v7x per-TC VMEM)


def _pick_row_block(rows, gran, cap, est_fn, budget):
    """Row tile for the projection kernel: multiple of `gran`, <= cap, fits the
    VMEM budget, and minimizes row padding (ties -> larger tile)."""
    upper = max(gran, min(cap, _round_up(rows, gran)))
    cands = list(range(gran, upper + 1, gran))
    fitting = [b for b in cands if est_fn(b) <= budget] or [gran]
    best_bm, best_key = None, None
    for b in fitting:
        key = (_round_up(rows, b) - rows, -b)
        if best_key is None or key < best_key:
            best_key, best_bm = key, b
    return best_bm


def _pick_q_tile(n, batch, est_fn, budget, gran):
    """Query tile: divides N (or == N), multiple of `gran`, fits the budget.
    Prefers 256-/128-aligned tiles (MXU granularity); keeps >=2 tiles when
    B == 1 so both v7x TensorCores get work."""
    cands = [d for d in range(gran, n + 1, gran) if n % d == 0]
    if n not in cands:
        cands.append(n)
    if batch == 1:
        multi = [d for d in cands if n // d >= 2]
        if multi:
            cands = multi
    for align in (256, 128, gran, 1):
        fit = [d for d in cands if d % align == 0 and est_fn(d) <= budget]
        if fit:
            return max(fit)
    return min(cands)  # nothing fits the budget: smallest legal tile


# ----------------------------------------------------------------------------
# Fused (Q|K|V) projection kernel, writing head-major outputs.
# ----------------------------------------------------------------------------
def _proj_heads_kernel(x_ref, w_ref, b_ref, *o_refs):
    # x: (bm, Cin)  w: (Cin, Ctot)  b: (1, Ctot) f32
    # o_refs[j]: (num_heads_j, bm, width_j); columns consumed head-major.
    acc = jnp.dot(x_ref[...], w_ref[...], preferred_element_type=jnp.float32)
    acc = acc + b_ref[...]
    off = 0
    for o_ref in o_refs:
        nh, _, width = o_ref.shape
        for h in range(nh):  # static: 128-aligned lane slices, single stores
            o_ref[h] = acc[:, off:off + width].astype(o_ref.dtype)
            off += width


def project_heads(x2d, weights, biases, head_counts, head_dims, *,
                  compute_dtype, vmem_cap, row_cap=1024):
    """out_j = head-major (H_j, Rp, d_j) of x2d @ weights_j + biases_j.
    Rp >= rows; padded rows contain bias junk and must never be addressed."""
    rows, cin = x2d.shape
    w_cat = jnp.concatenate(weights, axis=1).astype(compute_dtype)
    b_cat = jnp.concatenate(biases, axis=0).reshape(1, -1).astype(jnp.float32)
    ctot = w_cat.shape[1]
    cb = _bytes(compute_dtype)
    gran = 16 if _is_bf16(compute_dtype) else 8
    budget = int(vmem_cap * 0.45)

    def est(bm):
        return (2 * bm * cin * cb + 2 * cin * ctot * cb + 2 * ctot * 4
                + 2 * bm * ctot * cb          # double-buffered outputs
                + bm * ctot * 4)              # f32 accumulator temporary

    bm = _pick_row_block(rows, gran, row_cap, est, budget)
    rp_rows = _round_up(rows, bm)
    xp = x2d if rp_rows == rows else jnp.pad(x2d, ((0, rp_rows - rows), (0, 0)))
    out_shapes = tuple(jax.ShapeDtypeStruct((nh, rp_rows, hd), compute_dtype)
                       for nh, hd in zip(head_counts, head_dims))
    out_specs = tuple(pl.BlockSpec((nh, bm, hd), lambda i: (0, i, 0))
                      for nh, hd in zip(head_counts, head_dims))
    vmem_limit = int(min(vmem_cap * 0.9,
                         max(est(bm) * 1.5 + (4 << 20), 32 << 20)))
    outs = pl.pallas_call(
        _proj_heads_kernel,
        out_shape=out_shapes,
        grid=(rp_rows // bm,),
        in_specs=[
            pl.BlockSpec((bm, cin), lambda i: (i, 0)),
            pl.BlockSpec((cin, ctot), lambda i: (0, 0)),
            pl.BlockSpec((1, ctot), lambda i: (0, 0)),
        ],
        out_specs=out_specs,
        compiler_params=pltpu.CompilerParams(
            dimension_semantics=("parallel",),
            vmem_limit_bytes=vmem_limit),
    )(xp.astype(compute_dtype), w_cat, b_cat)
    if not isinstance(outs, (tuple, list)):
        outs = (outs,)
    return tuple(outs)


# ----------------------------------------------------------------------------
# Fused attention + output-projection kernel.
# ----------------------------------------------------------------------------
def _attn_proj_kernel(q_ref, k_ref, v_ref, rp_ref, pw_ref, pb_ref, o_ref,
                      acc_ref, *, num_heads, compute_dtype, approx_recip):
    # q_ref : (H, tq, dqk_p)   k_ref : (H, M, dqk_p)   v_ref : (H, M, dv_p)
    # rp_ref: (H, tq, M)       pw_ref: (H, dv_p, Cp)   pb_ref: (1, Cp) f32
    # o_ref : (tq, Cp)         acc_ref: (tq, Cp) f32 VMEM scratch
    acc_ref[...] = jnp.zeros_like(acc_ref)

    def head_body(h, carry):
        # One head per iteration: fori_loop bounds live ranges / spills.
        # (qk scale was folded into the Q projection weights.)
        s = lax.dot_general(q_ref[h], k_ref[h], (((1,), (1,)), ((), ())),
                            preferred_element_type=jnp.float32)
        s = s + rp_ref[h].astype(jnp.float32)
        m = jnp.max(s, axis=-1, keepdims=True)
        p = jnp.exp(s - m)
        l = jnp.sum(p, axis=-1, keepdims=True)
        o_h = jnp.dot(p.astype(compute_dtype), v_ref[h],
                      preferred_element_type=jnp.float32)
        o_h = o_h * pl.reciprocal(l, approx=approx_recip)
        # Fused output projection: this head's channel-block of proj_w.
        acc_ref[...] += jnp.dot(o_h.astype(compute_dtype), pw_ref[h],
                                preferred_element_type=jnp.float32)
        return carry

    lax.fori_loop(0, num_heads, head_body, 0)
    o_ref[...] = (acc_ref[...] + pb_ref[...]).astype(o_ref.dtype)


def fused_attention_proj(q, k, v, rel_pos, proj_w, proj_b, *, batch, n_tokens,
                         compute_dtype):
    """q: (H, RqP, dqk_p), k/v: (H, RkP, dqk_p/dv_p) flat head-major rows
    (row = b * tokens + token), rel_pos: (H, N, M), proj_w: (H, dv_p, Cp),
    proj_b: (1, Cp).  Returns (B, N, Cp)."""
    num_heads, _, dqk_p = q.shape
    dv_p = v.shape[2]
    cp = proj_w.shape[2]
    n = n_tokens
    m = rel_pos.shape[2]
    b_sz = batch
    cb = _bytes(compute_dtype)
    rb = _bytes(rel_pos.dtype)
    cap = _vmem_capacity()
    budget = int(cap * 0.45)

    def est(tq):
        blocks = (2 * num_heads * tq * dqk_p * cb                 # q
                  + 2 * num_heads * m * (dqk_p + dv_p) * cb       # k, v
                  + 2 * num_heads * tq * m * rb                   # rel_pos
                  + 2 * num_heads * dv_p * cp * cb                # proj_w
                  + 2 * cp * 4                                    # proj_b
                  + 2 * tq * cp * cb)                             # out
        scratch = tq * cp * 4
        temps = 4 * tq * m * 4 + tq * dv_p * 4
        return blocks + scratch + temps

    gran = 16 if _is_bf16(compute_dtype) else 8
    tq = _pick_q_tile(n, b_sz, est, budget, gran)
    nt = n // tq

    # Grid order: keep the larger of {K/V (per batch), rel_pos} resident.
    kv_bytes = num_heads * m * (dqk_p + dv_p) * cb
    rp_bytes = num_heads * n * m * rb
    t_outer = b_sz > 1 and (nt * b_sz * kv_bytes + rp_bytes
                            < b_sz * kv_bytes + b_sz * rp_bytes)
    if t_outer:
        grid = (nt, b_sz)
        q_map = lambda t, b: (0, b * nt + t, 0)
        kv_map = lambda t, b: (0, b, 0)
        rp_map = lambda t, b: (0, t, 0)
        w_map = lambda t, b: (0, 0, 0)
        b_map = lambda t, b: (0, 0)
        o_map = lambda t, b: (b, t, 0)
    else:
        grid = (b_sz, nt)
        q_map = lambda b, t: (0, b * nt + t, 0)
        kv_map = lambda b, t: (0, b, 0)
        rp_map = lambda b, t: (0, t, 0)
        w_map = lambda b, t: (0, 0, 0)
        b_map = lambda b, t: (0, 0)
        o_map = lambda b, t: (b, t, 0)

    vmem_limit = int(min(cap * 0.9, max(est(tq) * 1.5 + (4 << 20), 32 << 20)))
    kern = functools.partial(
        _attn_proj_kernel, num_heads=num_heads, compute_dtype=compute_dtype,
        approx_recip=_is_bf16(compute_dtype))
    # TODO(synk): on v7x, pl.Buffered(1) on the K/V specs (batch-outer order)
    # could free their second VMEM buffer for a larger query tile.
    return pl.pallas_call(
        kern,
        out_shape=jax.ShapeDtypeStruct((b_sz, n, cp), compute_dtype),
        grid=grid,
        in_specs=[
            pl.BlockSpec((num_heads, tq, dqk_p), q_map),
            pl.BlockSpec((num_heads, m, dqk_p), kv_map),
            pl.BlockSpec((num_heads, m, dv_p), kv_map),
            pl.BlockSpec((num_heads, tq, m), rp_map),
            pl.BlockSpec((num_heads, dv_p, cp), w_map),
            pl.BlockSpec((1, cp), b_map),
        ],
        out_specs=pl.BlockSpec((None, tq, cp), o_map),
        scratch_shapes=[pltpu.VMEM((tq, cp), jnp.float32)],
        compiler_params=pltpu.CompilerParams(
            dimension_semantics=("parallel", "parallel"),
            vmem_limit_bytes=vmem_limit),
    )(q, k, v, rel_pos, proj_w, proj_b)


# ----------------------------------------------------------------------------
# Parameter prep (padding / scale folding), sr-reduction, forward.
# ----------------------------------------------------------------------------
def prepare_attention_params(params, *, dim, num_heads, qk_ratio=1,
                             qk_scale=None, compute_dtype=jnp.float32):
    qk_dim = dim // qk_ratio
    hd_qk = qk_dim // num_heads
    hd_v = dim // num_heads
    scale = qk_scale if qk_scale is not None else hd_v ** (-0.5)
    dqk_p = _round_up(hd_qk, LANE)
    dv_p = _round_up(hd_v, LANE)
    c_p = _round_up(dim, LANE)

    def pad_heads(w, b, hd, hd_p):
        cin = w.shape[0]
        w3 = jnp.pad(w.reshape(cin, num_heads, hd),
                     ((0, 0), (0, 0), (0, hd_p - hd)))
        b2 = jnp.pad(b.reshape(num_heads, hd), ((0, 0), (0, hd_p - hd)))
        return w3.reshape(cin, num_heads * hd_p), b2.reshape(num_heads * hd_p)

    # qk scale folded into the Q projection: (s*q) @ k^T == s * (q @ k^T).
    q_w, q_b = pad_heads(params["q_w"] * scale, params["q_b"] * scale,
                         hd_qk, dqk_p)
    k_w, k_b = pad_heads(params["k_w"], params["k_b"], hd_qk, dqk_p)
    v_w, v_b = pad_heads(params["v_w"], params["v_b"], hd_v, dv_p)
    proj_w = jnp.pad(params["proj_w"].reshape(num_heads, hd_v, dim),
                     ((0, 0), (0, dv_p - hd_v), (0, c_p - dim)))
    proj_b = jnp.pad(params["proj_b"], (0, c_p - dim)).reshape(1, c_p)
    return {
        "q_w": q_w, "q_b": q_b, "k_w": k_w, "k_b": k_b, "v_w": v_w, "v_b": v_b,
        "proj_w": proj_w.astype(compute_dtype),
        "proj_b": proj_b.astype(jnp.float32),
        "dqk_p": dqk_p, "dv_p": dv_p, "c_p": c_p,
    }


def sr_reduce(params, x, H, W, sr):
    # TODO(synk): depthwise conv (k=stride=sr, groups=dim) + BatchNorm kept in
    # plain JAX glue; it is tiny relative to the attention hot path.
    B, N, C = x.shape
    x_ = x.transpose(0, 2, 1).reshape(B, C, H, W)               # NCHW
    x_ = x_.reshape(B, C, H // sr, sr, W // sr, sr)
    y = jnp.einsum("bchpwq,cpq->bchw", x_, params["sr_conv_w"])
    y = y + params["sr_conv_b"][None, :, None, None]
    inv = params["bn_gamma"] / jnp.sqrt(params["bn_var"] + 1e-5)
    y = (y - params["bn_mean"][None, :, None, None]) * inv[None, :, None, None]
    y = y + params["bn_beta"][None, :, None, None]
    return y.reshape(B, C, -1).transpose(0, 2, 1)               # (B, M, C)


def attention_forward(params, x, H, W, relative_pos, *, dim, num_heads=8,
                      qk_ratio=1, sr_ratio=1, qk_scale=None,
                      compute_dtype=jnp.float32):
    B, N, C = x.shape
    prep = prepare_attention_params(params, dim=dim, num_heads=num_heads,
                                    qk_ratio=qk_ratio, qk_scale=qk_scale,
                                    compute_dtype=compute_dtype)
    cap = _vmem_capacity()
    x2d = x.reshape(B * N, C)

    # Key/value token stream (possibly spatially reduced).  Pad the key count
    # to the sublane granularity; padded keys are masked via rel_pos = -1e30.
    xkv = sr_reduce(params, x, H, W, sr_ratio) if sr_ratio > 1 else x
    M = xkv.shape[1]
    kv_gran = 16 if _is_bf16(compute_dtype) else 8
    m_p = _round_up(M, kv_gran)
    rel = relative_pos
    if m_p != M:
        xkv = jnp.pad(xkv, ((0, 0), (0, m_p - M), (0, 0)))
        rel = jnp.pad(rel, ((0, 0), (0, 0), (0, m_p - M)),
                      constant_values=-1e30)

    if sr_ratio == 1 and m_p == M:
        # Fully fused Q|K|V projection over the same token stream.
        q, k, v = project_heads(
            x2d,
            [prep["q_w"], prep["k_w"], prep["v_w"]],
            [prep["q_b"], prep["k_b"], prep["v_b"]],
            [num_heads] * 3, [prep["dqk_p"], prep["dqk_p"], prep["dv_p"]],
            compute_dtype=compute_dtype, vmem_cap=cap)
    else:
        (q,) = project_heads(
            x2d, [prep["q_w"]], [prep["q_b"]], [num_heads], [prep["dqk_p"]],
            compute_dtype=compute_dtype, vmem_cap=cap)
        k, v = project_heads(
            xkv.reshape(B * m_p, C),
            [prep["k_w"], prep["v_w"]], [prep["k_b"], prep["v_b"]],
            [num_heads, num_heads], [prep["dqk_p"], prep["dv_p"]],
            compute_dtype=compute_dtype, vmem_cap=cap)

    out = fused_attention_proj(
        q, k, v, rel.astype(compute_dtype), prep["proj_w"], prep["proj_b"],
        batch=B, n_tokens=N, compute_dtype=compute_dtype)
    return out[:, :, :dim].astype(x.dtype)


# ----------------------------------------------------------------------------
# Parameter init and pure-JAX reference (correctness check).
# ----------------------------------------------------------------------------
def init_attention_params(key, dim, num_heads=8, qkv_bias=False, qk_ratio=1,
                          sr_ratio=1):
    qk_dim = dim // qk_ratio
    ks = jax.random.split(key, 8)
    p = {
        "q_w": jax.random.normal(ks[0], (dim, qk_dim), jnp.float32) * 0.02,
        "k_w": jax.random.normal(ks[1], (dim, qk_dim), jnp.float32) * 0.02,
        "v_w": jax.random.normal(ks[2], (dim, dim), jnp.float32) * 0.02,
        "proj_w": jax.random.normal(ks[3], (dim, dim), jnp.float32) * 0.02,
        "proj_b": jax.random.normal(ks[4], (dim,), jnp.float32) * 0.02,
        "q_b": jnp.zeros((qk_dim,), jnp.float32),
        "k_b": jnp.zeros((qk_dim,), jnp.float32),
        "v_b": jnp.zeros((dim,), jnp.float32),
    }
    if qkv_bias:
        p["q_b"] = jax.random.normal(ks[5], (qk_dim,), jnp.float32) * 0.02
        p["k_b"] = jax.random.normal(ks[6], (qk_dim,), jnp.float32) * 0.02
        p["v_b"] = jax.random.normal(ks[7], (dim,), jnp.float32) * 0.02
    if sr_ratio > 1:
        ks2 = jax.random.split(jax.random.fold_in(key, 17), 2)
        p["sr_conv_w"] = jax.random.normal(
            ks2[0], (dim, sr_ratio, sr_ratio), jnp.float32) * 0.1
        p["sr_conv_b"] = jax.random.normal(ks2[1], (dim,), jnp.float32) * 0.1
        p["bn_gamma"] = jnp.ones((dim,), jnp.float32)
        p["bn_beta"] = jnp.zeros((dim,), jnp.float32)
        p["bn_mean"] = jnp.zeros((dim,), jnp.float32)
        p["bn_var"] = jnp.ones((dim,), jnp.float32)
    return p


def reference_forward(params, x, H, W, relative_pos, *, dim, num_heads=8,
                      qk_ratio=1, sr_ratio=1, qk_scale=None):
    B, N, C = x.shape
    head_dim = dim // num_heads
    scale = qk_scale if qk_scale is not None else head_dim ** (-0.5)
    qk_dim = dim // qk_ratio
    q = (x @ params["q_w"] + params["q_b"]).reshape(
        B, N, num_heads, qk_dim // num_heads).transpose(0, 2, 1, 3)
    x_ = sr_reduce(params, x, H, W, sr_ratio) if sr_ratio > 1 else x
    Nk = x_.shape[1]
    k = (x_ @ params["k_w"] + params["k_b"]).reshape(
        B, Nk, num_heads, qk_dim // num_heads).transpose(0, 2, 1, 3)
    v = (x_ @ params["v_w"] + params["v_b"]).reshape(
        B, Nk, num_heads, C // num_heads).transpose(0, 2, 1, 3)
    attn = jnp.einsum("bhnd,bhmd->bhnm", q, k) * scale + relative_pos[None]
    attn = jax.nn.softmax(attn, axis=-1)
    o = jnp.einsum("bhnm,bhmd->bhnd", attn, v)
    o = o.transpose(0, 2, 1, 3).reshape(B, N, C)
    return o @ params["proj_w"] + params["proj_b"]


# ----------------------------------------------------------------------------
if __name__ == "__main__":
    B, dim, num_heads = 2, 32, 8
    H = W = 8
    N = H * W

    key = jax.random.PRNGKey(0)
    kx, kr1, kr2, kp = jax.random.split(key, 4)
    x = jax.random.normal(kx, (B, N, dim), jnp.float32)

    ok = True
    for sr_ratio, krp in ((1, kr1), (2, kr2)):
        M = N // (sr_ratio * sr_ratio)
        relative_pos = jax.random.normal(krp, (num_heads, N, M), jnp.float32)
        params = init_attention_params(kp, dim, num_heads=num_heads,
                                       qkv_bias=False, qk_ratio=1,
                                       sr_ratio=sr_ratio)
        ref = reference_forward(params, x, H, W, relative_pos, dim=dim,
                                num_heads=num_heads, sr_ratio=sr_ratio)

        # f32 path: tight tolerance.
        out = attention_forward(params, x, H, W, relative_pos, dim=dim,
                                num_heads=num_heads, sr_ratio=sr_ratio,
                                compute_dtype=jnp.float32)
        out = jax.block_until_ready(out)
        assert out.shape == (B, N, dim)
        ok &= bool(jnp.allclose(out, ref, rtol=1e-4, atol=1e-4))

        # bf16 MXU path (f32 softmax / accumulation): loose tolerance.
        out_bf = attention_forward(params, x, H, W, relative_pos, dim=dim,
                                   num_heads=num_heads, sr_ratio=sr_ratio,
                                   compute_dtype=jnp.bfloat16)
        out_bf = jax.block_until_ready(out_bf)
        ok &= bool(jnp.allclose(out_bf, ref, rtol=5e-2, atol=5e-2))

    if ok:
        print("KERNEL_OK")
    else:
        print("MISMATCH")
</pallas_src>

<mosaic_0001>
module attributes {stable_mosaic.version = 11 : i64} {
  func.func @_proj_heads_kernel(%arg0: i32, %arg1: memref<128x32xf32, #tpu.memory_space<vmem>>, %arg2: memref<32x3072xf32, #tpu.memory_space<vmem>>, %arg3: memref<1x3072xf32, #tpu.memory_space<vmem>>, %arg4: memref<8x128x128xf32, #tpu.memory_space<vmem>>, %arg5: memref<8x128x128xf32, #tpu.memory_space<vmem>>, %arg6: memref<8x128x128xf32, #tpu.memory_space<vmem>>) attributes {dimension_semantics = [#tpu.dimension_semantics<parallel>], iteration_bounds = array<i64: 1>, scalar_prefetch = 0 : i64, scratch_operands = 0 : i64, tpu.core_type = #tpu.core_type<tc>, window_params = [{transform_indices = @transform_0, window_bounds = array<i64: 128, 32>}, {pipeline_mode = #tpu.pipeline_mode<synchronous>, transform_indices = @transform_1, window_bounds = array<i64: 32, 3072>}, {pipeline_mode = #tpu.pipeline_mode<synchronous>, transform_indices = @transform_2, window_bounds = array<i64: 1, 3072>}, {transform_indices = @transform_3, window_bounds = array<i64: 8, 128, 128>}, {transform_indices = @transform_4, window_bounds = array<i64: 8, 128, 128>}, {transform_indices = @transform_5, window_bounds = array<i64: 8, 128, 128>}]} {
    %c0 = arith.constant 0 : index
    %c0_0 = arith.constant 0 : index
    %0 = vector.load %arg1[%c0, %c0_0] : memref<128x32xf32, #tpu.memory_space<vmem>>, vector<128x32xf32>
    %c0_1 = arith.constant 0 : index
    %c0_2 = arith.constant 0 : index
    %1 = vector.load %arg2[%c0_1, %c0_2] : memref<32x3072xf32, #tpu.memory_space<vmem>>, vector<32x3072xf32>
    %cst = arith.constant dense<0.000000e+00> : vector<128x3072xf32>
    %2 = tpu.matmul %0, %1, %cst {dimension_numbers = #tpu.dot_dimension_numbers<[1], [0], [0], [1], [0, 0, 1, 1], [], []>} : vector<128x32xf32>, vector<32x3072xf32>, vector<128x3072xf32> -> vector<128x3072xf32>
    %c0_3 = arith.constant 0 : index
    %c0_4 = arith.constant 0 : index
    %3 = vector.load %arg3[%c0_3, %c0_4] : memref<1x3072xf32, #tpu.memory_space<vmem>>, vector<1x3072xf32>
    %4 = vector.broadcast %3 : vector<1x3072xf32> to vector<128x3072xf32>
    %5 = arith.addf %2, %4 : vector<128x3072xf32>
    %6 = vector.extract_strided_slice %5 {offsets = [0, 0], sizes = [128, 128], strides = [1, 1]} : vector<128x3072xf32> to vector<128x128xf32>
    %c0_5 = arith.constant 0 : index
    %c0_6 = arith.constant 0 : index
    %c0_7 = arith.constant 0 : index
    %7 = vector.load %arg4[%c0_5, %c0_6, %c0_7] : memref<8x128x128xf32, #tpu.memory_space<vmem>>, vector<1x128x128xf32>
    %8 = vector.shape_cast %7 : vector<1x128x128xf32> to vector<128x128xf32>
    %9 = vector.shape_cast %6 : vector<128x128xf32> to vector<1x128x128xf32>
    tpu.vector_store %arg4[%c0_5, %c0_6, %c0_7], %9 {strides = array<i32>} : memref<8x128x128xf32, #tpu.memory_space<vmem>>, vector<1x128x128xf32>,
    %10 = vector.extract_strided_slice %5 {offsets = [0, 128], sizes = [128, 128], strides = [1, 1]} : vector<128x3072xf32> to vector<128x128xf32>
    %c1 = arith.constant 1 : index
    %c0_8 = arith.constant 0 : index
    %c0_9 = arith.constant 0 : index
    %11 = vector.load %arg4[%c1, %c0_8, %c0_9] : memref<8x128x128xf32, #tpu.memory_space<vmem>>, vector<1x128x128xf32>
    %12 = vector.shape_cast %11 : vector<1x128x128xf32> to vector<128x128xf32>
    %13 = vector.shape_cast %10 : vector<128x128xf32> to vector<1x128x128xf32>
    tpu.vector_store %arg4[%c1, %c0_8, %c0_9], %13 {strides = array<i32>} : memref<8x128x128xf32, #tpu.memory_space<vmem>>, vector<1x128x128xf32>,
    %14 = vector.extract_strided_slice %5 {offsets = [0, 256], sizes = [128, 128], strides = [1, 1]} : vector<128x3072xf32> to vector<128x128xf32>
    %c2 = arith.constant 2 : index
    %c0_10 = arith.constant 0 : index
    %c0_11 = arith.constant 0 : index
    %15 = vector.load %arg4[%c2, %c0_10, %c0_11] : memref<8x128x128xf32, #tpu.memory_space<vmem>>, vector<1x128x128xf32>
    %16 = vector.shape_cast %15 : vector<1x128x128xf32> to vector<128x128xf32>
    %17 = vector.shape_cast %14 : vector<128x128xf32> to vector<1x128x128xf32>
    tpu.vector_store %arg4[%c2, %c0_10, %c0_11], %17 {strides = array<i32>} : memref<8x128x128xf32, #tpu.memory_space<vmem>>, vector<1x128x128xf32>,
    %18 = vector.extract_strided_slice %5 {offsets = [0, 384], sizes = [128, 128], strides = [1, 1]} : vector<128x3072xf32> to vector<128x128xf32>
    %c3 = arith.constant 3 : index
    %c0_12 = arith.constant 0 : index
    %c0_13 = arith.constant 0 : index
    %19 = vector.load %arg4[%c3, %c0_12, %c0_13] : memref<8x128x128xf32, #tpu.memory_space<vmem>>, vector<1x128x128xf32>
    %20 = vector.shape_cast %19 : vector<1x128x128xf32> to vector<128x128xf32>
    %21 = vector.shape_cast %18 : vector<128x128xf32> to vector<1x128x128xf32>
    tpu.vector_store %arg4[%c3, %c0_12, %c0_13], %21 {strides = array<i32>} : memref<8x128x128xf32, #tpu.memory_space<vmem>>, vector<1x128x128xf32>,
    %22 = vector.extract_strided_slice %5 {offsets = [0, 512], sizes = [128, 128], strides = [1, 1]} : vector<128x3072xf32> to vector<128x128xf32>
    %c4 = arith.constant 4 : index
    %c0_14 = arith.constant 0 : index
    %c0_15 = arith.constant 0 : index
    %23 = vector.load %arg4[%c4, %c0_14, %c0_15] : memref<8x128x128xf32, #tpu.memory_space<vmem>>, vector<1x128x128xf32>
    %24 = vector.shape_cast %23 : vector<1x128x128xf32> to vector<128x128xf32>
    %25 = vector.shape_cast %22 : vector<128x128xf32> to vector<1x128x128xf32>
    tpu.vector_store %arg4[%c4, %c0_14, %c0_15], %25 {strides = array<i32>} : memref<8x128x128xf32, #tpu.memory_space<vmem>>, vector<1x128x128xf32>,
    %26 = vector.extract_strided_slice %5 {offsets = [0, 640], sizes = [128, 128], strides = [1, 1]} : vector<128x3072xf32> to vector<128x128xf32>
    %c5 = arith.constant 5 : index
    %c0_16 = arith.constant 0 : index
    %c0_17 = arith.constant 0 : index
    %27 = vector.load %arg4[%c5, %c0_16, %c0_17] : memref<8x128x128xf32, #tpu.memory_space<vmem>>, vector<1x128x128xf32>
    %28 = vector.shape_cast %27 : vector<1x128x128xf32> to vector<128x128xf32>
    %29 = vector.shape_cast %26 : vector<128x128xf32> to vector<1x128x128xf32>
    tpu.vector_store %arg4[%c5, %c0_16, %c0_17], %29 {strides = array<i32>} : memref<8x128x128xf32, #tpu.memory_space<vmem>>, vector<1x128x128xf32>,
    %30 = vector.extract_strided_slice %5 {offsets = [0, 768], sizes = [128, 128], strides = [1, 1]} : vector<128x3072xf32> to vector<128x128xf32>
    %c6 = arith.constant 6 : index
    %c0_18 = arith.constant 0 : index
    %c0_19 = arith.constant 0 : index
    %31 = vector.load %arg4[%c6, %c0_18, %c0_19] : memref<8x128x128xf32, #tpu.memory_space<vmem>>, vector<1x128x128xf32>
    %32 = vector.shape_cast %31 : vector<1x128x128xf32> to vector<128x128xf32>
    %33 = vector.shape_cast %30 : vector<128x128xf32> to vector<1x128x128xf32>
    tpu.vector_store %arg4[%c6, %c0_18, %c0_19], %33 {strides = array<i32>} : memref<8x128x128xf32, #tpu.memory_space<vmem>>, vector<1x128x128xf32>,
    %34 = vector.extract_strided_slice %5 {offsets = [0, 896], sizes = [128, 128], strides = [1, 1]} : vector<128x3072xf32> to vector<128x128xf32>
    %c7 = arith.constant 7 : index
    %c0_20 = arith.constant 0 : index
    %c0_21 = arith.constant 0 : index
    %35 = vector.load %arg4[%c7, %c0_20, %c0_21] : memref<8x128x128xf32, #tpu.memory_space<vmem>>, vector<1x128x128xf32>
    %36 = vector.shape_cast %35 : vector<1x128x128xf32> to vector<128x128xf32>
    %37 = vector.shape_cast %34 : vector<128x128xf32> to vector<1x128x128xf32>
    tpu.vector_store %arg4[%c7, %c0_20, %c0_21], %37 {strides = array<i32>} : memref<8x128x128xf32, #tpu.memory_space<vmem>>, vector<1x128x128xf32>,
    %38 = vector.extract_strided_slice %5 {offsets = [0, 1024], sizes = [128, 128], strides = [1, 1]} : vector<128x3072xf32> to vector<128x128xf32>
    %c0_22 = arith.constant 0 : index
    %c0_23 = arith.constant 0 : index
    %c0_24 = arith.constant 0 : index
    %39 = vector.load %arg5[%c0_22, %c0_23, %c0_24] : memref<8x128x128xf32, #tpu.memory_space<vmem>>, vector<1x128x128xf32>
    %40 = vector.shape_cast %39 : vector<1x128x128xf32> to vector<128x128xf32>
    %41 = vector.shape_cast %38 : vector<128x128xf32> to vector<1x128x128xf32>
    tpu.vector_store %arg5[%c0_22, %c0_23, %c0_24], %41 {strides = array<i32>} : memref<8x128x128xf32, #tpu.memory_space<vmem>>, vector<1x128x128xf32>,
    %42 = vector.extract_strided_slice %5 {offsets = [0, 1152], sizes = [128, 128], strides = [1, 1]} : vector<128x3072xf32> to vector<128x128xf32>
    %c1_25 = arith.constant 1 : index
    %c0_26 = arith.constant 0 : index
    %c0_27 = arith.constant 0 : index
    %43 = vector.load %arg5[%c1_25, %c0_26, %c0_27] : memref<8x128x128xf32, #tpu.memory_space<vmem>>, vector<1x128x128xf32>
    %44 = vector.shape_cast %43 : vector<1x128x128xf32> to vector<128x128xf32>
    %45 = vector.shape_cast %42 : vector<128x128xf32> to vector<1x128x128xf32>
    tpu.vector_store %arg5[%c1_25, %c0_26, %c0_27], %45 {strides = array<i32>} : memref<8x128x128xf32, #tpu.memory_space<vmem>>, vector<1x128x128xf32>,
    %46 = vector.extract_strided_slice %5 {offsets = [0, 1280], sizes = [128, 128], strides = [1, 1]} : vector<128x3072xf32> to vector<128x128xf32>
    %c2_28 = arith.constant 2 : index
    %c0_29 = arith.constant 0 : index
    %c0_30 = arith.constant 0 : index
    %47 = vector.load %arg5[%c2_28, %c0_29, %c0_30] : memref<8x128x128xf32, #tpu.memory_space<vmem>>, vector<1x128x128xf32>
    %48 = vector.shape_cast %47 : vector<1x128x128xf32> to vector<128x128xf32>
    %49 = vector.shape_cast %46 : vector<128x128xf32> to vector<1x128x128xf32>
    tpu.vector_store %arg5[%c2_28, %c0_29, %c0_30], %49 {strides = array<i32>} : memref<8x128x128xf32, #tpu.memory_space<vmem>>, vector<1x128x128xf32>,
    %50 = vector.extract_strided_slice %5 {offsets = [0, 1408], sizes = [128, 128], strides = [1, 1]} : vector<128x3072xf32> to vector<128x128xf32>
    %c3_31 = arith.constant 3 : index
    %c0_32 = arith.constant 0 : index
    %c0_33 = arith.constant 0 : index
    %51 = vector.load %arg5[%c3_31, %c0_32, %c0_33] : memref<8x128x128xf32, #tpu.memory_space<vmem>>, vector<1x128x128xf32>
    %52 = vector.shape_cast %51 : vector<1x128x128xf32> to vector<128x128xf32>
    %53 = vector.shape_cast %50 : vector<128x128xf32> to vector<1x128x128xf32>
    tpu.vector_store %arg5[%c3_31, %c0_32, %c0_33], %53 {strides = array<i32>} : memref<8x128x128xf32, #tpu.memory_space<vmem>>, vector<1x128x128xf32>,
    %54 = vector.extract_strided_slice %5 {offsets = [0, 1536], sizes = [128, 128], strides = [1, 1]} : vector<128x3072xf32> to vector<128x128xf32>
    %c4_34 = arith.constant 4 : index
    %c0_35 = arith.constant 0 : index
    %c0_36 = arith.constant 0 : index
    %55 = vector.load %arg5[%c4_34, %c0_35, %c0_36] : memref<8x128x128xf32, #tpu.memory_space<vmem>>, vector<1x128x128xf32>
    %56 = vector.shape_cast %55 : vector<1x128x128xf32> to vector<128x128xf32>
    %57 = vector.shape_cast %54 : vector<128x128xf32> to vector<1x128x128xf32>
    tpu.vector_store %arg5[%c4_34, %c0_35, %c0_36], %57 {strides = array<i32>} : memref<8x128x128xf32, #tpu.memory_space<vmem>>, vector<1x128x128xf32>,
    %58 = vector.extract_strided_slice %5 {offsets = [0, 1664], sizes = [128, 128], strides = [1, 1]} : vector<128x3072xf32> to vector<128x128xf32>
    %c5_37 = arith.constant 5 : index
    %c0_38 = arith.constant 0 : index
    %c0_39 = arith.constant 0 : index
    %59 = vector.load %arg5[%c5_37, %c0_38, %c0_39] : memref<8x128x128xf32, #tpu.memory_space<vmem>>, vector<1x128x128xf32>
    %60 = vector.shape_cast %59 : vector<1x128x128xf32> to vector<128x128xf32>
    %61 = vector.shape_cast %58 : vector<128x128xf32> to vector<1x128x128xf32>
    tpu.vector_store %arg5[%c5_37, %c0_38, %c0_39], %61 {strides = array<i32>} : memref<8x128x128xf32, #tpu.memory_space<vmem>>, vector<1x128x128xf32>,
    %62 = vector.extract_strided_slice %5 {offsets = [0, 1792], sizes = [128, 128], strides = [1, 1]} : vector<128x3072xf32> to vector<128x128xf32>
    %c6_40 = arith.constant 6 : index
    %c0_41 = arith.constant 0 : index
    %c0_42 = arith.constant 0 : index
    %63 = vector.load %arg5[%c6_40, %c0_41, %c0_42] : memref<8x128x128xf32, #tpu.memory_space<vmem>>, vector<1x128x128xf32>
    %64 = vector.shape_cast %63 : vector<1x128x128xf32> to vector<128x128xf32>
    %65 = vector.shape_cast %62 : vector<128x128xf32> to vector<1x128x128xf32>
    tpu.vector_store %arg5[%c6_40, %c0_41, %c0_42], %65 {strides = array<i32>} : memref<8x128x128xf32, #tpu.memory_space<vmem>>, vector<1x128x128xf32>,
    %66 = vector.extract_strided_slice %5 {offsets = [0, 1920], sizes = [128, 128], strides = [1, 1]} : vector<128x3072xf32> to vector<128x128xf32>
    %c7_43 = arith.constant 7 : index
    %c0_44 = arith.constant 0 : index
    %c0_45 = arith.constant 0 : index
    %67 = vector.load %arg5[%c7_43, %c0_44, %c0_45] : memref<8x128x128xf32, #tpu.memory_space<vmem>>, vector<1x128x128xf32>
    %68 = vector.shape_cast %67 : vector<1x128x128xf32> to vector<128x128xf32>
    %69 = vector.shape_cast %66 : vector<128x128xf32> to vector<1x128x128xf32>
    tpu.vector_store %arg5[%c7_43, %c0_44, %c0_45], %69 {strides = array<i32>} : memref<8x128x128xf32, #tpu.memory_space<vmem>>, vector<1x128x128xf32>,
    %70 = vector.extract_strided_slice %5 {offsets = [0, 2048], sizes = [128, 128], strides = [1, 1]} : vector<128x3072xf32> to vector<128x128xf32>
    %c0_46 = arith.constant 0 : index
    %c0_47 = arith.constant 0 : index
    %c0_48 = arith.constant 0 : index
    %71 = vector.load %arg6[%c0_46, %c0_47, %c0_48] : memref<8x128x128xf32, #tpu.memory_space<vmem>>, vector<1x128x128xf32>
    %72 = vector.shape_cast %71 : vector<1x128x128xf32> to vector<128x128xf32>
    %73 = vector.shape_cast %70 : vector<128x128xf32> to vector<1x128x128xf32>
    tpu.vector_store %arg6[%c0_46, %c0_47, %c0_48], %73 {strides = array<i32>} : memref<8x128x128xf32, #tpu.memory_space<vmem>>, vector<1x128x128xf32>,
    %74 = vector.extract_strided_slice %5 {offsets = [0, 2176], sizes = [128, 128], strides = [1, 1]} : vector<128x3072xf32> to vector<128x128xf32>
    %c1_49 = arith.constant 1 : index
    %c0_50 = arith.constant 0 : index
    %c0_51 = arith.constant 0 : index
    %75 = vector.load %arg6[%c1_49, %c0_50, %c0_51] : memref<8x128x128xf32, #tpu.memory_space<vmem>>, vector<1x128x128xf32>
    %76 = vector.shape_cast %75 : vector<1x128x128xf32> to vector<128x128xf32>
    %77 = vector.shape_cast %74 : vector<128x128xf32> to vector<1x128x128xf32>
    tpu.vector_store %arg6[%c1_49, %c0_50, %c0_51], %77 {strides = array<i32>} : memref<8x128x128xf32, #tpu.memory_space<vmem>>, vector<1x128x128xf32>,
    %78 = vector.extract_strided_slice %5 {offsets = [0, 2304], sizes = [128, 128], strides = [1, 1]} : vector<128x3072xf32> to vector<128x128xf32>
    %c2_52 = arith.constant 2 : index
    %c0_53 = arith.constant 0 : index
    %c0_54 = arith.constant 0 : index
    %79 = vector.load %arg6[%c2_52, %c0_53, %c0_54] : memref<8x128x128xf32, #tpu.memory_space<vmem>>, vector<1x128x128xf32>
    %80 = vector.shape_cast %79 : vector<1x128x128xf32> to vector<128x128xf32>
    %81 = vector.shape_cast %78 : vector<128x128xf32> to vector<1x128x128xf32>
    tpu.vector_store %arg6[%c2_52, %c0_53, %c0_54], %81 {strides = array<i32>} : memref<8x128x128xf32, #tpu.memory_space<vmem>>, vector<1x128x128xf32>,
    %82 = vector.extract_strided_slice %5 {offsets = [0, 2432], sizes = [128, 128], strides = [1, 1]} : vector<128x3072xf32> to vector<128x128xf32>
    %c3_55 = arith.constant 3 : index
    %c0_56 = arith.constant 0 : index
    %c0_57 = arith.constant 0 : index
    %83 = vector.load %arg6[%c3_55, %c0_56, %c0_57] : memref<8x128x128xf32, #tpu.memory_space<vmem>>, vector<1x128x128xf32>
    %84 = vector.shape_cast %83 : vector<1x128x128xf32> to vector<128x128xf32>
    %85 = vector.shape_cast %82 : vector<128x128xf32> to vector<1x128x128xf32>
    tpu.vector_store %arg6[%c3_55, %c0_56, %c0_57], %85 {strides = array<i32>} : memref<8x128x128xf32, #tpu.memory_space<vmem>>, vector<1x128x128xf32>,
    %86 = vector.extract_strided_slice %5 {offsets = [0, 2560], sizes = [128, 128], strides = [1, 1]} : vector<128x3072xf32> to vector<128x128xf32>
    %c4_58 = arith.constant 4 : index
    %c0_59 = arith.constant 0 : index
    %c0_60 = arith.constant 0 : index
    %87 = vector.load %arg6[%c4_58, %c0_59, %c0_60] : memref<8x128x128xf32, #tpu.memory_space<vmem>>, vector<1x128x128xf32>
    %88 = vector.shape_cast %87 : vector<1x128x128xf32> to vector<128x128xf32>
    %89 = vector.shape_cast %86 : vector<128x128xf32> to vector<1x128x128xf32>
    tpu.vector_store %arg6[%c4_58, %c0_59, %c0_60], %89 {strides = array<i32>} : memref<8x128x128xf32, #tpu.memory_space<vmem>>, vector<1x128x128xf32>,
    %90 = vector.extract_strided_slice %5 {offsets = [0, 2688], sizes = [128, 128], strides = [1, 1]} : vector<128x3072xf32> to vector<128x128xf32>
    %c5_61 = arith.constant 5 : index
    %c0_62 = arith.constant 0 : index
    %c0_63 = arith.constant 0 : index
    %91 = vector.load %arg6[%c5_61, %c0_62, %c0_63] : memref<8x128x128xf32, #tpu.memory_space<vmem>>, vector<1x128x128xf32>
    %92 = vector.shape_cast %91 : vector<1x128x128xf32> to vector<128x128xf32>
    %93 = vector.shape_cast %90 : vector<128x128xf32> to vector<1x128x128xf32>
    tpu.vector_store %arg6[%c5_61, %c0_62, %c0_63], %93 {strides = array<i32>} : memref<8x128x128xf32, #tpu.memory_space<vmem>>, vector<1x128x128xf32>,
    %94 = vector.extract_strided_slice %5 {offsets = [0, 2816], sizes = [128, 128], strides = [1, 1]} : vector<128x3072xf32> to vector<128x128xf32>
    %c6_64 = arith.constant 6 : index
    %c0_65 = arith.constant 0 : index
    %c0_66 = arith.constant 0 : index
    %95 = vector.load %arg6[%c6_64, %c0_65, %c0_66] : memref<8x128x128xf32, #tpu.memory_space<vmem>>, vector<1x128x128xf32>
    %96 = vector.shape_cast %95 : vector<1x128x128xf32> to vector<128x128xf32>
    %97 = vector.shape_cast %94 : vector<128x128xf32> to vector<1x128x128xf32>
    tpu.vector_store %arg6[%c6_64, %c0_65, %c0_66], %97 {strides = array<i32>} : memref<8x128x128xf32, #tpu.memory_space<vmem>>, vector<1x128x128xf32>,
    %98 = vector.extract_strided_slice %5 {offsets = [0, 2944], sizes = [128, 128], strides = [1, 1]} : vector<128x3072xf32> to vector<128x128xf32>
    %c7_67 = arith.constant 7 : index
    %c0_68 = arith.constant 0 : index
    %c0_69 = arith.constant 0 : index
    %99 = vector.load %arg6[%c7_67, %c0_68, %c0_69] : memref<8x128x128xf32, #tpu.memory_space<vmem>>, vector<1x128x128xf32>
    %100 = vector.shape_cast %99 : vector<1x128x128xf32> to vector<128x128xf32>
    %101 = vector.shape_cast %98 : vector<128x128xf32> to vector<1x128x128xf32>
    tpu.vector_store %arg6[%c7_67, %c0_68, %c0_69], %101 {strides = array<i32>} : memref<8x128x128xf32, #tpu.memory_space<vmem>>, vector<1x128x128xf32>,
    return
  }
  func.func @transform_0(%arg0: i32) -> (i32, i32) {
    %c0_i32 = arith.constant 0 : i32
    %c0_i32_0 = arith.constant 0 : i32
    return %arg0, %c0_i32 : i32, i32
  }
  func.func @transform_1(%arg0: i32) -> (i32, i32) {
    %c0_i32 = arith.constant 0 : i32
    %c0_i32_0 = arith.constant 0 : i32
    %c0_i32_1 = arith.constant 0 : i32
    return %c0_i32, %c0_i32_0 : i32, i32
  }
  func.func @transform_2(%arg0: i32) -> (i32, i32) {
    %c0_i32 = arith.constant 0 : i32
    %c0_i32_0 = arith.constant 0 : i32
    %c0_i32_1 = arith.constant 0 : i32
    return %c0_i32, %c0_i32_0 : i32, i32
  }
  func.func @transform_3(%arg0: i32) -> (i32, i32, i32) {
    %c0_i32 = arith.constant 0 : i32
    %c0_i32_0 = arith.constant 0 : i32
    %c0_i32_1 = arith.constant 0 : i32
    return %c0_i32, %arg0, %c0_i32_0 : i32, i32, i32
  }
  func.func @transform_4(%arg0: i32) -> (i32, i32, i32) {
    %c0_i32 = arith.constant 0 : i32
    %c0_i32_0 = arith.constant 0 : i32
    %c0_i32_1 = arith.constant 0 : i32
    return %c0_i32, %arg0, %c0_i32_0 : i32, i32, i32
  }
  func.func @transform_5(%arg0: i32) -> (i32, i32, i32) {
    %c0_i32 = arith.constant 0 : i32
    %c0_i32_0 = arith.constant 0 : i32
    %c0_i32_1 = arith.constant 0 : i32
    return %c0_i32, %arg0, %c0_i32_0 : i32, i32, i32
  }
}

</mosaic_0001>

<llo_original>
// kernel: tpu_custom_call.1
$region0: #{tpu_custom_call.1}
  #allocation0 [shape = 'u32[]', space=smem, size = 0x4, offset = 0x4, fixed_abs, tag = 'smem constant byte address 0x4 - core index']
  #allocation1 [shape = 'u32[72,128]{1,0:T(1,128)}', space=vmem, size = 0x9000, scoped, tag = 'internal scratch']
  %s0 = inlined_call_operand.vmem [shape: f32[128,32], index: 0, kind: input, shape index: {}]
  %s1 = inlined_call_operand.hbm [shape: f32[32,3072], index: 1, kind: input, shape index: {}]
  %s2 = inlined_call_operand.vmem [shape: f32[1,3072], index: 2, kind: input, shape index: {}]
  %s3 = inlined_call_operand.hbm [shape: f32[8,128,128], index: 3, kind: output, shape index: {0}]
  %s4 = inlined_call_operand.hbm [shape: f32[8,128,128], index: 4, kind: output, shape index: {1}]
  %s5 = inlined_call_operand.hbm [shape: f32[8,128,128], index: 5, kind: output, shape index: {2}]
  %6 = xla_tuple %s3, %s4, %s5
  %s7 = sld [smem:[#allocation0]]
  $region42: #{tpu_custom_call.1} parent=0
    _
  %s9 = ssub.s32 1, %s7
  %s10 = scalar_select 0, %s9, %s7
  $region1: #{tpu_custom_call.1} parent=0
    #allocation2 [shape = 'u8[393216]{0}', space=vmem, size = 0x60000, scoped, tag = 'input window, operand 1, single buffered']
    #allocation3 [shape = 's32[1]{0}', space=sflag, size = 0x4, scoped, tag = 'scoped memory for tpu_custom_call.1']
    #allocation4 [shape = 's32[1]{0}', space=sflag, size = 0x4, scoped, tag = 'scoped memory for tpu_custom_call.1']
    #allocation5 [shape = 'u8[524288]{0}', space=vmem, size = 0x80000, scoped, tag = 'output window, operand 0, single buffered']
    #allocation6 [shape = 'u8[524288]{0}', space=vmem, size = 0x80000, scoped, tag = 'output window, operand 1, single buffered']
    #allocation7 [shape = 's32[1]{0}', space=sflag, size = 0x4, scoped, tag = 'scoped memory for tpu_custom_call.1']
    #allocation8 [shape = 'u8[524288]{0}', space=vmem, size = 0x80000, scoped, tag = 'output window, operand 2, single buffered']
    %11 = vsyncpa [#allocation3], 0
    %12 = vsyncpa [#allocation4], 0
    %13 = vsyncpa [#allocation7], 0
    // Predicated region
    $region2: #{tpu_custom_call.1} parent=1 // pred_check
      _
    $region3: #{tpu_custom_call.1} parent=1 // pred_check_branch
      %15 = sbr.rel (0) target = $region5
    $region4: #{tpu_custom_call.1} parent=1 // pred_region
      _
    $region5: #{tpu_custom_call.1} parent=1 // pred_fallthru
      _
    // Predicated region
    $region6: #{tpu_custom_call.1} parent=1 // pred_check
      _
    $region7: #{tpu_custom_call.1} parent=1 // pred_check_branch
      %17 = sbr.rel (0) target = $region9
    $region8: #{tpu_custom_call.1} parent=1 // pred_region
      %19 = vsyncadd [#allocation3], 0
      %s20 = sshll.u32 %s1, 4
      %s21 = int_to_ptr.hbm [resolvable:$true] %s20
      %s22 = sshll.u32 [#allocation2], 4
      %s23 = int_to_ptr.vmem [resolvable:$true] %s22
      %28 = dma.hbm_to_vmem [thread:$0]  %s21, 12288, %s23, [#allocation3], 3072, 3072, 192
    $region9: #{tpu_custom_call.1} parent=1 // pred_fallthru
      _
    // Predicated region
    $region10: #{tpu_custom_call.1} parent=1 // pred_check
      _
    $region11: #{tpu_custom_call.1} parent=1 // pred_check_branch
      %30 = sbr.rel (0) target = $region13
    $region12: #{tpu_custom_call.1} parent=1 // pred_region
      _
    $region13: #{tpu_custom_call.1} parent=1 // pred_fallthru
      _
    // Predicated region
    $region14: #{tpu_custom_call.1} parent=1 // pred_check
      _
    $region15: #{tpu_custom_call.1} parent=1 // pred_check_branch
      %32 = sbr.rel (0) target = $region17
    $region16: #{tpu_custom_call.1} parent=1 // pred_region
      %34 = dma.done [#allocation3], 12288
    $region17: #{tpu_custom_call.1} parent=1 // pred_fallthru
      _
    %v35 = vld [vmem:[%s0] sm:$0xff]
    %v36 = vld [vmem:[%s0 + $0x8] sm:$0xff]
    %v37 = vld [vmem:[%s0 + $0x10] sm:$0xff]
    %v38 = vld [vmem:[%s0 + $0x18] sm:$0xff]
    %v39 = vld [vmem:[%s0 + $0x20] sm:$0xff]
    %v40 = vld [vmem:[%s0 + $0x28] sm:$0xff]
    %v41 = vld [vmem:[%s0 + $0x30] sm:$0xff]
    %v42 = vld [vmem:[%s0 + $0x38] sm:$0xff]
    %v43 = vld [vmem:[%s0 + $0x40] sm:$0xff]
    %v44 = vld [vmem:[%s0 + $0x48] sm:$0xff]
    %v45 = vld [vmem:[%s0 + $0x50] sm:$0xff]
    %v46 = vld [vmem:[%s0 + $0x58] sm:$0xff]
    %v47 = vld [vmem:[%s0 + $0x60] sm:$0xff]
    %v48 = vld [vmem:[%s0 + $0x68] sm:$0xff]
    %v49 = vld [vmem:[%s0 + $0x70] sm:$0xff]
    %v50 = vld [vmem:[%s0 + $0x78] sm:$0xff]
    %v51 = vld [vmem:[#allocation2] sm:$0xff]
    %v52 = vld [vmem:[#allocation2 + $0x8] sm:$0xff]
    %v53 = vld [vmem:[#allocation2 + $0x10] sm:$0xff]
    %v54 = vld [vmem:[#allocation2 + $0x18] sm:$0xff]
    %v55 = vld [vmem:[#allocation2 + $0x20] sm:$0xff]
    %v56 = vld [vmem:[#allocation2 + $0x28] sm:$0xff]
    %v57 = vld [vmem:[#allocation2 + $0x30] sm:$0xff]
    %v58 = vld [vmem:[#allocation2 + $0x38] sm:$0xff]
    %v59 = vld [vmem:[#allocation2 + $0x40] sm:$0xff]
    %v60 = vld [vmem:[#allocation2 + $0x48] sm:$0xff]
    %v61 = vld [vmem:[#allocation2 + $0x50] sm:$0xff]
    %v62 = vld [vmem:[#allocation2 + $0x58] sm:$0xff]
    %v63 = vld [vmem:[#allocation2 + $0x60] sm:$0xff]
    %v64 = vld [vmem:[#allocation2 + $0x68] sm:$0xff]
    %v65 = vld [vmem:[#allocation2 + $0x70] sm:$0xff]
    %v66 = vld [vmem:[#allocation2 + $0x78] sm:$0xff]
    %v67 = vld [vmem:[#allocation2 + $0x80] sm:$0xff]
    %v68 = vld [vmem:[#allocation2 + $0x88] sm:$0xff]
    %v69 = vld [vmem:[#allocation2 + $0x90] sm:$0xff]
    %v70 = vld [vmem:[#allocation2 + $0x98] sm:$0xff]
    %v71 = vld [vmem:[#allocation2 + $0xa0] sm:$0xff]
    %v72 = vld [vmem:[#allocation2 + $0xa8] sm:$0xff]
    %v73 = vld [vmem:[#allocation2 + $0xb0] sm:$0xff]
    %v74 = vld [vmem:[#allocation2 + $0xb8] sm:$0xff]
    %v75 = vld [vmem:[#allocation2 + $0xc0] sm:$0xff]
    %v76 = vld [vmem:[#allocation2 + $0xc8] sm:$0xff]
    %v77 = vld [vmem:[#allocation2 + $0xd0] sm:$0xff]
    %v78 = vld [vmem:[#allocation2 + $0xd8] sm:$0xff]
    %v79 = vld [vmem:[#allocation2 + $0xe0] sm:$0xff]
    %v80 = vld [vmem:[#allocation2 + $0xe8] sm:$0xff]
    %v81 = vld [vmem:[#allocation2 + $0xf0] sm:$0xff]
    %v82 = vld [vmem:[#allocation2 + $0xf8] sm:$0xff]
    %v83 = vld [vmem:[#allocation2 + $0x100] sm:$0xff]
    %v84 = vld [vmem:[#allocation2 + $0x108] sm:$0xff]
    %v85 = vld [vmem:[#allocation2 + $0x110] sm:$0xff]
    %v86 = vld [vmem:[#allocation2 + $0x118] sm:$0xff]
    %v87 = vld [vmem:[#allocation2 + $0x120] sm:$0xff]
    %v88 = vld [vmem:[#allocation2 + $0x128] sm:$0xff]
    %v89 = vld [vmem:[#allocation2 + $0x130] sm:$0xff]
    %v90 = vld [vmem:[#allocation2 + $0x138] sm:$0xff]
    %v91 = vld [vmem:[#allocation2 + $0x140] sm:$0xff]
    %v92 = vld [vmem:[#allocation2 + $0x148] sm:$0xff]
    %v93 = vld [vmem:[#allocation2 + $0x150] sm:$0xff]
    %v94 = vld [vmem:[#allocation2 + $0x158] sm:$0xff]
    %v95 = vld [vmem:[#allocation2 + $0x160] sm:$0xff]
    %v96 = vld [vmem:[#allocation2 + $0x168] sm:$0xff]
    %v97 = vld [vmem:[#allocation2 + $0x170] sm:$0xff]
    %v98 = vld [vmem:[#allocation2 + $0x178] sm:$0xff]
    %v99 = vld [vmem:[#allocation2 + $0x180] sm:$0xff]
    %v100 = vld [vmem:[#allocation2 + $0x188] sm:$0xff]
    %v101 = vld [vmem:[#allocation2 + $0x190] sm:$0xff]
    %v102 = vld [vmem:[#allocation2 + $0x198] sm:$0xff]
    %v103 = vld [vmem:[#allocation2 + $0x1a0] sm:$0xff]
    %v104 = vld [vmem:[#allocation2 + $0x1a8] sm:$0xff]
    %v105 = vld [vmem:[#allocation2 + $0x1b0] sm:$0xff]
    %v106 = vld [vmem:[#allocation2 + $0x1b8] sm:$0xff]
    %v107 = vld [vmem:[#allocation2 + $0x1c0] sm:$0xff]
    %v108 = vld [vmem:[#allocation2 + $0x1c8] sm:$0xff]
    %v109 = vld [vmem:[#allocation2 + $0x1d0] sm:$0xff]
    %v110 = vld [vmem:[#allocation2 + $0x1d8] sm:$0xff]
    %v111 = vld [vmem:[#allocation2 + $0x1e0] sm:$0xff]
    %v112 = vld [vmem:[#allocation2 + $0x1e8] sm:$0xff]
    %v113 = vld [vmem:[#allocation2 + $0x1f0] sm:$0xff]
    %v114 = vld [vmem:[#allocation2 + $0x1f8] sm:$0xff]
    %v115 = vld [vmem:[#allocation2 + $0x200] sm:$0xff]
    %v116 = vld [vmem:[#allocation2 + $0x208] sm:$0xff]
    %v117 = vld [vmem:[#allocation2 + $0x210] sm:$0xff]
    %v118 = vld [vmem:[#allocation2 + $0x218] sm:$0xff]
    %v119 = vld [vmem:[#allocation2 + $0x220] sm:$0xff]
    %v120 = vld [vmem:[#allocation2 + $0x228] sm:$0xff]
    %v121 = vld [vmem:[#allocation2 + $0x230] sm:$0xff]
    %v122 = vld [vmem:[#allocation2 + $0x238] sm:$0xff]
    %v123 = vld [vmem:[#allocation2 + $0x240] sm:$0xff]
    %v124 = vld [vmem:[#allocation2 + $0x248] sm:$0xff]
    %v125 = vld [vmem:[#allocation2 + $0x250] sm:$0xff]
    %v126 = vld [vmem:[#allocation2 + $0x258] sm:$0xff]
    %v127 = vld [vmem:[#allocation2 + $0x260] sm:$0xff]
    %v128 = vld [vmem:[#allocation2 + $0x268] sm:$0xff]
    %v129 = vld [vmem:[#allocation2 + $0x270] sm:$0xff]
    %v130 = vld [vmem:[#allocation2 + $0x278] sm:$0xff]
    %v131 = vld [vmem:[#allocation2 + $0x280] sm:$0xff]
    %v132 = vld [vmem:[#allocation2 + $0x288] sm:$0xff]
    %v133 = vld [vmem:[#allocation2 + $0x290] sm:$0xff]
    %v134 = vld [vmem:[#allocation2 + $0x298] sm:$0xff]
    %v135 = vld [vmem:[#allocation2 + $0x2a0] sm:$0xff]
    %v136 = vld [vmem:[#allocation2 + $0x2a8] sm:$0xff]
    %v137 = vld [vmem:[#allocation2 + $0x2b0] sm:$0xff]
    %v138 = vld [vmem:[#allocation2 + $0x2b8] sm:$0xff]
    %v139 = vld [vmem:[#allocation2 + $0x2c0] sm:$0xff]
    %v140 = vld [vmem:[#allocation2 + $0x2c8] sm:$0xff]
    %v141 = vld [vmem:[#allocation2 + $0x2d0] sm:$0xff]
    %v142 = vld [vmem:[#allocation2 + $0x2d8] sm:$0xff]
    %v143 = vld [vmem:[#allocation2 + $0x2e0] sm:$0xff]
    %v144 = vld [vmem:[#allocation2 + $0x2e8] sm:$0xff]
    %v145 = vld [vmem:[#allocation2 + $0x2f0] sm:$0xff]
    %v146 = vld [vmem:[#allocation2 + $0x2f8] sm:$0xff]
    %v147 = vld [vmem:[%s2] sm:$0xff]
    %v148 = vld [vmem:[%s2 + $0x8] sm:$0xff]
    %v149 = vld [vmem:[%s2 + $0x10] sm:$0xff]
    %v153 = vperm.slane %v147, 0
    %v154 = vperm.slane %v147, 1
    %v155 = vperm.slane %v147, 2
    %v156 = vperm.slane %v147, 3
    %v157 = vperm.slane %v147, 4
    %v158 = vperm.slane %v147, 5
    %v159 = vperm.slane %v147, 6
    %v160 = vperm.slane %v147, 7
    %v161 = vperm.slane %v148, 0
    %v162 = vperm.slane %v148, 1
    %v163 = vperm.slane %v148, 2
    %v164 = vperm.slane %v148, 3
    %v165 = vperm.slane %v148, 4
    %v166 = vperm.slane %v148, 5
    %v167 = vperm.slane %v148, 6
    %v168 = vperm.slane %v148, 7
    %v169 = vperm.slane %v149, 0
    %v170 = vperm.slane %v149, 1
    %v171 = vperm.slane %v149, 2
    %v172 = vperm.slane %v149, 3
    %v173 = vperm.slane %v149, 4
    %v174 = vperm.slane %v149, 5
    %v175 = vperm.slane %v149, 6
    %v176 = vperm.slane %v149, 7
    %vm201 = vcmask 261120
    %v203 = vsel %vm201, %v35, 0
    %v206 = vsel %vm201, %v36, 0
    %v209 = vsel %vm201, %v37, 0
    %v212 = vsel %vm201, %v38, 0
    %v215 = vsel %vm201, %v39, 0
    %v218 = vsel %vm201, %v40, 0
    %v221 = vsel %vm201, %v41, 0
    %v224 = vsel %vm201, %v42, 0
    %v227 = vsel %vm201, %v43, 0
    %v230 = vsel %vm201, %v44, 0
    %v233 = vsel %vm201, %v45, 0
    %v236 = vsel %vm201, %v46, 0
    %v239 = vsel %vm201, %v47, 0
    %v242 = vsel %vm201, %v48, 0
    %v245 = vsel %vm201, %v49, 0
    %v248 = vsel %vm201, %v50, 0
    %250 = vmatpush.msra.mxu0 0.0
    %251 = vmatpush.msra.mxu0 0.0
    %252 = vmatpush.msra.mxu0 0.0
    %253 = vmatpush.msra.mxu0 0.0
    %254 = vmatpush.msra.mxu0 0.0
    %255 = vmatpush.msra.mxu0 0.0
    %256 = vmatpush.msra.mxu0 0.0
    %257 = vmatpush.msra.mxu0 0.0
    %258 = vmatpush.msra.mxu0 0.0
    %259 = vmatpush.msra.mxu0 0.0
    %260 = vmatpush.msra.mxu0 0.0
    %261 = vmatpush.msra.mxu0 0.0
    %262 = vmatpush.msra.mxu0 %v123
    %263 = vmatpush.msra.mxu0 %v99
    %264 = vmatpush.msra.mxu0 %v75
    %265 = vmatpush.msra.mxu0 %v51
    %266 = vmatmul.f32.gmra.mxu0 %v203
    %v267 = vpop.f32.mrf.mxu0
    %v268 = vadd.f32 %v153, %v267
    %269 = vmatmul.f32.gmra.mxu0 %v206
    %v270 = vpop.f32.mrf.mxu0
    %v271 = vadd.f32 %v153, %v270
    %272 = vmatmul.f32.gmra.mxu0 %v209
    %v273 = vpop.f32.mrf.mxu0
    %v274 = vadd.f32 %v153, %v273
    %275 = vmatmul.f32.gmra.mxu0 %v212
    %v276 = vpop.f32.mrf.mxu0
    %v277 = vadd.f32 %v153, %v276
    %278 = vmatmul.f32.gmra.mxu0 %v215
    %v279 = vpop.f32.mrf.mxu0
    %v280 = vadd.f32 %v153, %v279
    %281 = vmatmul.f32.gmra.mxu0 %v218
    %v282 = vpop.f32.mrf.mxu0
    %v283 = vadd.f32 %v153, %v282
    %284 = vmatmul.f32.gmra.mxu0 %v221
    %v285 = vpop.f32.mrf.mxu0
    %v286 = vadd.f32 %v153, %v285
    %287 = vmatmul.f32.gmra.mxu0 %v224
    %v288 = vpop.f32.mrf.mxu0
    %v289 = vadd.f32 %v153, %v288
    %290 = vmatmul.f32.gmra.mxu0 %v227
    %v291 = vpop.f32.mrf.mxu0
    %v292 = vadd.f32 %v153, %v291
    %293 = vmatmul.f32.gmra.mxu0 %v230
    %v294 = vpop.f32.mrf.mxu0
    %v295 = vadd.f32 %v153, %v294
    %296 = vmatmul.f32.gmra.mxu0 %v233
    %v297 = vpop.f32.mrf.mxu0
    %v298 = vadd.f32 %v153, %v297
    %299 = vmatmul.f32.gmra.mxu0 %v236
    %v300 = vpop.f32.mrf.mxu0
    %v301 = vadd.f32 %v153, %v300
    %302 = vmatmul.f32.gmra.mxu0 %v239
    %v303 = vpop.f32.mrf.mxu0
    %v304 = vadd.f32 %v153, %v303
    %305 = vmatmul.f32.gmra.mxu0 %v242
    %v306 = vpop.f32.mrf.mxu0
    %v307 = vadd.f32 %v153, %v306
    %308 = vmatmul.f32.gmra.mxu0 %v245
    %v309 = vpop.f32.mrf.mxu0
    %v310 = vadd.f32 %v153, %v309
    %311 = vmatmul.f32.gmra.mxu0 %v248
    %v312 = vpop.f32.mrf.mxu0
    %v313 = vadd.f32 %v153, %v312
    %314 = vdwg.mxu0
    %315 = vmatpush.msra.mxu0 0.0
    %316 = vmatpush.msra.mxu0 0.0
    %317 = vmatpush.msra.mxu0 0.0
    %318 = vmatpush.msra.mxu0 0.0
    %319 = vmatpush.msra.mxu0 0.0
    %320 = vmatpush.msra.mxu0 0.0
    %321 = vmatpush.msra.mxu0 0.0
    %322 = vmatpush.msra.mxu0 0.0
    %323 = vmatpush.msra.mxu0 0.0
    %324 = vmatpush.msra.mxu0 0.0
    %325 = vmatpush.msra.mxu0 0.0
    %326 = vmatpush.msra.mxu0 0.0
    %327 = vmatpush.msra.mxu0 %v124
    %328 = vmatpush.msra.mxu0 %v100
    %329 = vmatpush.msra.mxu0 %v76
    %330 = vmatpush.msra.mxu0 %v52
    %331 = vmatmul.f32.gmra.mxu0 %v203
    %v332 = vpop.f32.mrf.mxu0
    %v333 = vadd.f32 %v154, %v332
    %334 = vmatmul.f32.gmra.mxu0 %v206
    %v335 = vpop.f32.mrf.mxu0
    %v336 = vadd.f32 %v154, %v335
    %337 = vmatmul.f32.gmra.mxu0 %v209
    %v338 = vpop.f32.mrf.mxu0
    %v339 = vadd.f32 %v154, %v338
    %340 = vmatmul.f32.gmra.mxu0 %v212
    %v341 = vpop.f32.mrf.mxu0
    %v342 = vadd.f32 %v154, %v341
    %343 = vmatmul.f32.gmra.mxu0 %v215
    %v344 = vpop.f32.mrf.mxu0
    %v345 = vadd.f32 %v154, %v344
    %346 = vmatmul.f32.gmra.mxu0 %v218
    %v347 = vpop.f32.mrf.mxu0
    %v348 = vadd.f32 %v154, %v347
    %349 = vmatmul.f32.gmra.mxu0 %v221
    %v350 = vpop.f32.mrf.mxu0
    %v351 = vadd.f32 %v154, %v350
    %352 = vmatmul.f32.gmra.mxu0 %v224
    %v353 = vpop.f32.mrf.mxu0
    %v354 = vadd.f32 %v154, %v353
    %355 = vmatmul.f32.gmra.mxu0 %v227
    %v356 = vpop.f32.mrf.mxu0
    %v357 = vadd.f32 %v154, %v356
    %358 = vmatmul.f32.gmra.mxu0 %v230
    %v359 = vpop.f32.mrf.mxu0
    %v360 = vadd.f32 %v154, %v359
    %361 = vmatmul.f32.gmra.mxu0 %v233
    %v362 = vpop.f32.mrf.mxu0
    %v363 = vadd.f32 %v154, %v362
    %364 = vmatmul.f32.gmra.mxu0 %v236
    %v365 = vpop.f32.mrf.mxu0
    %v366 = vadd.f32 %v154, %v365
    %367 = vmatmul.f32.gmra.mxu0 %v239
    %v368 = vpop.f32.mrf.mxu0
    %v369 = vadd.f32 %v154, %v368
    %370 = vmatmul.f32.gmra.mxu0 %v242
    %v371 = vpop.f32.mrf.mxu0
    %v372 = vadd.f32 %v154, %v371
    %373 = vmatmul.f32.gmra.mxu0 %v245
    %v374 = vpop.f32.mrf.mxu0
    %v375 = vadd.f32 %v154, %v374
    %376 = vmatmul.f32.gmra.mxu0 %v248
    %v377 = vpop.f32.mrf.mxu0
    %v378 = vadd.f32 %v154, %v377
    %379 = vdwg.mxu0
    %380 = vmatpush.msra.mxu0 0.0
    %381 = vmatpush.msra.mxu0 0.0
    %382 = vmatpush.msra.mxu0 0.0
    %383 = vmatpush.msra.mxu0 0.0
    %384 = vmatpush.msra.mxu0 0.0
    %385 = vmatpush.msra.mxu0 0.0
    %386 = vmatpush.msra.mxu0 0.0
    %387 = vmatpush.msra.mxu0 0.0
    %388 = vmatpush.msra.mxu0 0.0
    %389 = vmatpush.msra.mxu0 0.0
    %390 = vmatpush.msra.mxu0 0.0
    %391 = vmatpush.msra.mxu0 0.0
    %392 = vmatpush.msra.mxu0 %v125
    %393 = vmatpush.msra.mxu0 %v101
    %394 = vmatpush.msra.mxu0 %v77
    %395 = vmatpush.msra.mxu0 %v53
    %396 = vmatmul.f32.gmra.mxu0 %v203
    %v397 = vpop.f32.mrf.mxu0
    %v398 = vadd.f32 %v155, %v397
    %399 = vmatmul.f32.gmra.mxu0 %v206
    %v400 = vpop.f32.mrf.mxu0
    %v401 = vadd.f32 %v155, %v400
    %402 = vmatmul.f32.gmra.mxu0 %v209
    %v403 = vpop.f32.mrf.mxu0
    %v404 = vadd.f32 %v155, %v403
    %405 = vmatmul.f32.gmra.mxu0 %v212
    %v406 = vpop.f32.mrf.mxu0
    %v407 = vadd.f32 %v155, %v406
    %408 = vmatmul.f32.gmra.mxu0 %v215
    %v409 = vpop.f32.mrf.mxu0
    %v410 = vadd.f32 %v155, %v409
    %411 = vmatmul.f32.gmra.mxu0 %v218
    %v412 = vpop.f32.mrf.mxu0
    %v413 = vadd.f32 %v155, %v412
    %414 = vmatmul.f32.gmra.mxu0 %v221
    %v415 = vpop.f32.mrf.mxu0
    %v416 = vadd.f32 %v155, %v415
    %417 = vmatmul.f32.gmra.mxu0 %v224
    %v418 = vpop.f32.mrf.mxu0
    %v419 = vadd.f32 %v155, %v418
    %420 = vmatmul.f32.gmra.mxu0 %v227
    %v421 = vpop.f32.mrf.mxu0
    %v422 = vadd.f32 %v155, %v421
    %423 = vmatmul.f32.gmra.mxu0 %v230
    %v424 = vpop.f32.mrf.mxu0
    %v425 = vadd.f32 %v155, %v424
    %426 = vmatmul.f32.gmra.mxu0 %v233
    %v427 = vpop.f32.mrf.mxu0
    %v428 = vadd.f32 %v155, %v427
    %429 = vmatmul.f32.gmra.mxu0 %v236
    %v430 = vpop.f32.mrf.mxu0
    %v431 = vadd.f32 %v155, %v430
    %432 = vmatmul.f32.gmra.mxu0 %v239
    %v433 = vpop.f32.mrf.mxu0
    %v434 = vadd.f32 %v155, %v433
    %435 = vmatmul.f32.gmra.mxu0 %v242
    %v436 = vpop.f32.mrf.mxu0
    %v437 = vadd.f32 %v155, %v436
    %438 = vmatmul.f32.gmra.mxu0 %v245
    %v439 = vpop.f32.mrf.mxu0
    %v440 = vadd.f32 %v155, %v439
    %441 = vmatmul.f32.gmra.mxu0 %v248
    %v442 = vpop.f32.mrf.mxu0
    %v443 = vadd.f32 %v155, %v442
    %444 = vdwg.mxu0
    %445 = vmatpush.msra.mxu0 0.0
    %446 = vmatpush.msra.mxu0 0.0
    %447 = vmatpush.msra.mxu0 0.0
    %448 = vmatpush.msra.mxu0 0.0
    %449 = vmatpush.msra.mxu0 0.0
    %450 = vmatpush.msra.mxu0 0.0
    %451 = vmatpush.msra.mxu0 0.0
    %452 = vmatpush.msra.mxu0 0.0
    %453 = vmatpush.msra.mxu0 0.0
    %454 = vmatpush.msra.mxu0 0.0
    %455 = vmatpush.msra.mxu0 0.0
    %456 = vmatpush.msra.mxu0 0.0
    %457 = vmatpush.msra.mxu0 %v126
    %458 = vmatpush.msra.mxu0 %v102
    %459 = vmatpush.msra.mxu0 %v78
    %460 = vmatpush.msra.mxu0 %v54
    %461 = vmatmul.f32.gmra.mxu0 %v203
    %v462 = vpop.f32.mrf.mxu0
    %v463 = vadd.f32 %v156, %v462
    %464 = vmatmul.f32.gmra.mxu0 %v206
    %v465 = vpop.f32.mrf.mxu0
    %v466 = vadd.f32 %v156, %v465
    %467 = vmatmul.f32.gmra.mxu0 %v209
    %v468 = vpop.f32.mrf.mxu0
    %v469 = vadd.f32 %v156, %v468
    %470 = vmatmul.f32.gmra.mxu0 %v212
    %v471 = vpop.f32.mrf.mxu0
    %v472 = vadd.f32 %v156, %v471
    %473 = vmatmul.f32.gmra.mxu0 %v215
    %v474 = vpop.f32.mrf.mxu0
    %v475 = vadd.f32 %v156, %v474
    %476 = vmatmul.f32.gmra.mxu0 %v218
    %v477 = vpop.f32.mrf.mxu0
    %v478 = vadd.f32 %v156, %v477
    %479 = vmatmul.f32.gmra.mxu0 %v221
    %v480 = vpop.f32.mrf.mxu0
    %v481 = vadd.f32 %v156, %v480
    %482 = vmatmul.f32.gmra.mxu0 %v224
    %v483 = vpop.f32.mrf.mxu0
    %v484 = vadd.f32 %v156, %v483
    %485 = vmatmul.f32.gmra.mxu0 %v227
    %v486 = vpop.f32.mrf.mxu0
    %v487 = vadd.f32 %v156, %v486
    %488 = vmatmul.f32.gmra.mxu0 %v230
    %v489 = vpop.f32.mrf.mxu0
    %v490 = vadd.f32 %v156, %v489
    %491 = vmatmul.f32.gmra.mxu0 %v233
    %v492 = vpop.f32.mrf.mxu0
    %v493 = vadd.f32 %v156, %v492
    %494 = vmatmul.f32.gmra.mxu0 %v236
    %v495 = vpop.f32.mrf.mxu0
    %v496 = vadd.f32 %v156, %v495
    %497 = vmatmul.f32.gmra.mxu0 %v239
    %v498 = vpop.f32.mrf.mxu0
    %v499 = vadd.f32 %v156, %v498
    %500 = vmatmul.f32.gmra.mxu0 %v242
    %v501 = vpop.f32.mrf.mxu0
    %v502 = vadd.f32 %v156, %v501
    %503 = vmatmul.f32.gmra.mxu0 %v245
    %v504 = vpop.f32.mrf.mxu0
    %v505 = vadd.f32 %v156, %v504
    %506 = vmatmul.f32.gmra.mxu0 %v248
    %v507 = vpop.f32.mrf.mxu0
    %v508 = vadd.f32 %v156, %v507
    %509 = vdwg.mxu0
    %510 = vmatpush.msra.mxu0 0.0
    %511 = vmatpush.msra.mxu0 0.0
    %512 = vmatpush.msra.mxu0 0.0
    %513 = vmatpush.msra.mxu0 0.0
    %514 = vmatpush.msra.mxu0 0.0
    %515 = vmatpush.msra.mxu0 0.0
    %516 = vmatpush.msra.mxu0 0.0
    %517 = vmatpush.msra.mxu0 0.0
    %518 = vmatpush.msra.mxu0 0.0
    %519 = vmatpush.msra.mxu0 0.0
    %520 = vmatpush.msra.mxu0 0.0
    %521 = vmatpush.msra.mxu0 0.0
    %522 = vmatpush.msra.mxu0 %v127
    %523 = vmatpush.msra.mxu0 %v103
    %524 = vmatpush.msra.mxu0 %v79
    %525 = vmatpush.msra.mxu0 %v55
    %526 = vmatmul.f32.gmra.mxu0 %v203
    %v527 = vpop.f32.mrf.mxu0
    %v528 = vadd.f32 %v157, %v527
    %529 = vmatmul.f32.gmra.mxu0 %v206
    %v530 = vpop.f32.mrf.mxu0
    %v531 = vadd.f32 %v157, %v530
    %532 = vmatmul.f32.gmra.mxu0 %v209
    %v533 = vpop.f32.mrf.mxu0
    %v534 = vadd.f32 %v157, %v533
    %535 = vmatmul.f32.gmra.mxu0 %v212
    %v536 = vpop.f32.mrf.mxu0
    %v537 = vadd.f32 %v157, %v536
    %538 = vmatmul.f32.gmra.mxu0 %v215
    %v539 = vpop.f32.mrf.mxu0
    %v540 = vadd.f32 %v157, %v539
    %541 = vmatmul.f32.gmra.mxu0 %v218
    %v542 = vpop.f32.mrf.mxu0
    %v543 = vadd.f32 %v157, %v542
    %544 = vmatmul.f32.gmra.mxu0 %v221
    %v545 = vpop.f32.mrf.mxu0
    %v546 = vadd.f32 %v157, %v545
    %547 = vmatmul.f32.gmra.mxu0 %v224
    %v548 = vpop.f32.mrf.mxu0
    %v549 = vadd.f32 %v157, %v548
    %550 = vmatmul.f32.gmra.mxu0 %v227
    %v551 = vpop.f32.mrf.mxu0
    %v552 = vadd.f32 %v157, %v551
    %553 = vmatmul.f32.gmra.mxu0 %v230
    %v554 = vpop.f32.mrf.mxu0
    %v555 = vadd.f32 %v157, %v554
    %556 = vmatmul.f32.gmra.mxu0 %v233
    %v557 = vpop.f32.mrf.mxu0
    %v558 = vadd.f32 %v157, %v557
    %559 = vmatmul.f32.gmra.mxu0 %v236
    %v560 = vpop.f32.mrf.mxu0
    %v561 = vadd.f32 %v157, %v560
    %562 = vmatmul.f32.gmra.mxu0 %v239
    %v563 = vpop.f32.mrf.mxu0
    %v564 = vadd.f32 %v157, %v563
    %565 = vmatmul.f32.gmra.mxu0 %v242
    %v566 = vpop.f32.mrf.mxu0
    %v567 = vadd.f32 %v157, %v566
    %568 = vmatmul.f32.gmra.mxu0 %v245
    %v569 = vpop.f32.mrf.mxu0
    %v570 = vadd.f32 %v157, %v569
    %571 = vmatmul.f32.gmra.mxu0 %v248
    %v572 = vpop.f32.mrf.mxu0
    %v573 = vadd.f32 %v157, %v572
    %574 = vdwg.mxu0
    %575 = vmatpush.msra.mxu0 0.0
    %576 = vmatpush.msra.mxu0 0.0
    %577 = vmatpush.msra.mxu0 0.0
    %578 = vmatpush.msra.mxu0 0.0
    %579 = vmatpush.msra.mxu0 0.0
    %580 = vmatpush.msra.mxu0 0.0
    %581 = vmatpush.msra.mxu0 0.0
    %582 = vmatpush.msra.mxu0 0.0
    %583 = vmatpush.msra.mxu0 0.0
    %584 = vmatpush.msra.mxu0 0.0
    %585 = vmatpush.msra.mxu0 0.0
    %586 = vmatpush.msra.mxu0 0.0
    %587 = vmatpush.msra.mxu0 %v128
    %588 = vmatpush.msra.mxu0 %v104
    %589 = vmatpush.msra.mxu0 %v80
    %590 = vmatpush.msra.mxu0 %v56
    %591 = vmatmul.f32.gmra.mxu0 %v203
    %v592 = vpop.f32.mrf.mxu0
    %v593 = vadd.f32 %v158, %v592
    %594 = vmatmul.f32.gmra.mxu0 %v206
    %v595 = vpop.f32.mrf.mxu0
    %v596 = vadd.f32 %v158, %v595
    %597 = vmatmul.f32.gmra.mxu0 %v209
    %v598 = vpop.f32.mrf.mxu0
    %v599 = vadd.f32 %v158, %v598
    %600 = vmatmul.f32.gmra.mxu0 %v212
    %v601 = vpop.f32.mrf.mxu0
    %v602 = vadd.f32 %v158, %v601
    %603 = vmatmul.f32.gmra.mxu0 %v215
    %v604 = vpop.f32.mrf.mxu0
    %v605 = vadd.f32 %v158, %v604
    %606 = vmatmul.f32.gmra.mxu0 %v218
    %v607 = vpop.f32.mrf.mxu0
    %v608 = vadd.f32 %v158, %v607
    %609 = vmatmul.f32.gmra.mxu0 %v221
    %v610 = vpop.f32.mrf.mxu0
    %v611 = vadd.f32 %v158, %v610
    %612 = vmatmul.f32.gmra.mxu0 %v224
    %v613 = vpop.f32.mrf.mxu0
    %v614 = vadd.f32 %v158, %v613
    %615 = vmatmul.f32.gmra.mxu0 %v227
    %v616 = vpop.f32.mrf.mxu0
    %v617 = vadd.f32 %v158, %v616
    %618 = vmatmul.f32.gmra.mxu0 %v230
    %v619 = vpop.f32.mrf.mxu0
    %v620 = vadd.f32 %v158, %v619
    %621 = vmatmul.f32.gmra.mxu0 %v233
    %v622 = vpop.f32.mrf.mxu0
    %v623 = vadd.f32 %v158, %v622
    %624 = vmatmul.f32.gmra.mxu0 %v236
    %v625 = vpop.f32.mrf.mxu0
    %v626 = vadd.f32 %v158, %v625
    %627 = vmatmul.f32.gmra.mxu0 %v239
    %v628 = vpop.f32.mrf.mxu0
    %v629 = vadd.f32 %v158, %v628
    %630 = vmatmul.f32.gmra.mxu0 %v242
    %v631 = vpop.f32.mrf.mxu0
    %v632 = vadd.f32 %v158, %v631
    %633 = vmatmul.f32.gmra.mxu0 %v245
    %v634 = vpop.f32.mrf.mxu0
    %v635 = vadd.f32 %v158, %v634
    %636 = vmatmul.f32.gmra.mxu0 %v248
    %v637 = vpop.f32.mrf.mxu0
    %v638 = vadd.f32 %v158, %v637
    %639 = vdwg.mxu0
    %640 = vmatpush.msra.mxu0 0.0
    %641 = vmatpush.msra.mxu0 0.0
    %642 = vmatpush.msra.mxu0 0.0
    %643 = vmatpush.msra.mxu0 0.0
    %644 = vmatpush.msra.mxu0 0.0
    %645 = vmatpush.msra.mxu0 0.0
    %646 = vmatpush.msra.mxu0 0.0
    %647 = vmatpush.msra.mxu0 0.0
    %648 = vmatpush.msra.mxu0 0.0
    %649 = vmatpush.msra.mxu0 0.0
    %650 = vmatpush.msra.mxu0 0.0
    %651 = vmatpush.msra.mxu0 0.0
    %652 = vmatpush.msra.mxu0 %v129
    %653 = vmatpush.msra.mxu0 %v105
    %654 = vmatpush.msra.mxu0 %v81
    %655 = vmatpush.msra.mxu0 %v57
    %656 = vmatmul.f32.gmra.mxu0 %v203
    %v657 = vpop.f32.mrf.mxu0
    %v658 = vadd.f32 %v159, %v657
    %659 = vmatmul.f32.gmra.mxu0 %v206
    %v660 = vpop.f32.mrf.mxu0
    %v661 = vadd.f32 %v159, %v660
    %662 = vmatmul.f32.gmra.mxu0 %v209
    %v663 = vpop.f32.mrf.mxu0
    %v664 = vadd.f32 %v159, %v663
    %665 = vmatmul.f32.gmra.mxu0 %v212
    %v666 = vpop.f32.mrf.mxu0
    %v667 = vadd.f32 %v159, %v666
    %668 = vmatmul.f32.gmra.mxu0 %v215
    %v669 = vpop.f32.mrf.mxu0
    %v670 = vadd.f32 %v159, %v669
    %671 = vmatmul.f32.gmra.mxu0 %v218
    %v672 = vpop.f32.mrf.mxu0
    %v673 = vadd.f32 %v159, %v672
    %674 = vmatmul.f32.gmra.mxu0 %v221
    %v675 = vpop.f32.mrf.mxu0
    %v676 = vadd.f32 %v159, %v675
    %677 = vmatmul.f32.gmra.mxu0 %v224
    %v678 = vpop.f32.mrf.mxu0
    %v679 = vadd.f32 %v159, %v678
    %680 = vmatmul.f32.gmra.mxu0 %v227
    %v681 = vpop.f32.mrf.mxu0
    %v682 = vadd.f32 %v159, %v681
    %683 = vmatmul.f32.gmra.mxu0 %v230
    %v684 = vpop.f32.mrf.mxu0
    %v685 = vadd.f32 %v159, %v684
    %686 = vmatmul.f32.gmra.mxu0 %v233
    %v687 = vpop.f32.mrf.mxu0
    %v688 = vadd.f32 %v159, %v687
    %689 = vmatmul.f32.gmra.mxu0 %v236
    %v690 = vpop.f32.mrf.mxu0
    %v691 = vadd.f32 %v159, %v690
    %692 = vmatmul.f32.gmra.mxu0 %v239
    %v693 = vpop.f32.mrf.mxu0
    %v694 = vadd.f32 %v159, %v693
    %695 = vmatmul.f32.gmra.mxu0 %v242
    %v696 = vpop.f32.mrf.mxu0
    %v697 = vadd.f32 %v159, %v696
    %698 = vmatmul.f32.gmra.mxu0 %v245
    %v699 = vpop.f32.mrf.mxu0
    %v700 = vadd.f32 %v159, %v699
    %701 = vmatmul.f32.gmra.mxu0 %v248
    %v702 = vpop.f32.mrf.mxu0
    %v703 = vadd.f32 %v159, %v702
    %704 = vdwg.mxu0
    %705 = vmatpush.msra.mxu0 0.0
    %706 = vmatpush.msra.mxu0 0.0
    %707 = vmatpush.msra.mxu0 0.0
    %708 = vmatpush.msra.mxu0 0.0
    %709 = vmatpush.msra.mxu0 0.0
    %710 = vmatpush.msra.mxu0 0.0
    %711 = vmatpush.msra.mxu0 0.0
    %712 = vmatpush.msra.mxu0 0.0
    %713 = vmatpush.msra.mxu0 0.0
    %714 = vmatpush.msra.mxu0 0.0
    %715 = vmatpush.msra.mxu0 0.0
    %716 = vmatpush.msra.mxu0 0.0
    %717 = vmatpush.msra.mxu0 %v130
    %718 = vmatpush.msra.mxu0 %v106
    %719 = vmatpush.msra.mxu0 %v82
    %720 = vmatpush.msra.mxu0 %v58
    %721 = vmatmul.f32.gmra.mxu0 %v203
    %v722 = vpop.f32.mrf.mxu0
    %v723 = vadd.f32 %v160, %v722
    %724 = vmatmul.f32.gmra.mxu0 %v206
    %v725 = vpop.f32.mrf.mxu0
    %v726 = vadd.f32 %v160, %v725
    %727 = vmatmul.f32.gmra.mxu0 %v209
    %v728 = vpop.f32.mrf.mxu0
    %v729 = vadd.f32 %v160, %v728
    %730 = vmatmul.f32.gmra.mxu0 %v212
    %v731 = vpop.f32.mrf.mxu0
    %v732 = vadd.f32 %v160, %v731
    %733 = vmatmul.f32.gmra.mxu0 %v215
    %v734 = vpop.f32.mrf.mxu0
    %v735 = vadd.f32 %v160, %v734
    %736 = vmatmul.f32.gmra.mxu0 %v218
    %v737 = vpop.f32.mrf.mxu0
    %v738 = vadd.f32 %v160, %v737
    %739 = vmatmul.f32.gmra.mxu0 %v221
    %v740 = vpop.f32.mrf.mxu0
    %v741 = vadd.f32 %v160, %v740
    %742 = vmatmul.f32.gmra.mxu0 %v224
    %v743 = vpop.f32.mrf.mxu0
    %v744 = vadd.f32 %v160, %v743
    %745 = vmatmul.f32.gmra.mxu0 %v227
    %v746 = vpop.f32.mrf.mxu0
    %v747 = vadd.f32 %v160, %v746
    %748 = vmatmul.f32.gmra.mxu0 %v230
    %v749 = vpop.f32.mrf.mxu0
    %v750 = vadd.f32 %v160, %v749
    %751 = vmatmul.f32.gmra.mxu0 %v233
    %v752 = vpop.f32.mrf.mxu0
    %v753 = vadd.f32 %v160, %v752
    %754 = vmatmul.f32.gmra.mxu0 %v236
    %v755 = vpop.f32.mrf.mxu0
    %v756 = vadd.f32 %v160, %v755
    %757 = vmatmul.f32.gmra.mxu0 %v239
    %v758 = vpop.f32.mrf.mxu0
    %v759 = vadd.f32 %v160, %v758
    %760 = vmatmul.f32.gmra.mxu0 %v242
    %v761 = vpop.f32.mrf.mxu0
    %v762 = vadd.f32 %v160, %v761
    %763 = vmatmul.f32.gmra.mxu0 %v245
    %v764 = vpop.f32.mrf.mxu0
    %v765 = vadd.f32 %v160, %v764
    %766 = vmatmul.f32.gmra.mxu0 %v248
    %v767 = vpop.f32.mrf.mxu0
    %v768 = vadd.f32 %v160, %v767
    %769 = vdwg.mxu0
    %770 = vmatpush.msra.mxu0 0.0
    %771 = vmatpush.msra.mxu0 0.0
    %772 = vmatpush.msra.mxu0 0.0
    %773 = vmatpush.msra.mxu0 0.0
    %774 = vmatpush.msra.mxu0 0.0
    %775 = vmatpush.msra.mxu0 0.0
    %776 = vmatpush.msra.mxu0 0.0
    %777 = vmatpush.msra.mxu0 0.0
    %778 = vmatpush.msra.mxu0 0.0
    %779 = vmatpush.msra.mxu0 0.0
    %780 = vmatpush.msra.mxu0 0.0
    %781 = vmatpush.msra.mxu0 0.0
    %782 = vmatpush.msra.mxu0 %v131
    %783 = vmatpush.msra.mxu0 %v107
    %784 = vmatpush.msra.mxu0 %v83
    %785 = vmatpush.msra.mxu0 %v59
    %786 = vmatmul.f32.gmra.mxu0 %v203
    %v787 = vpop.f32.mrf.mxu0
    %v788 = vadd.f32 %v161, %v787
    %789 = vmatmul.f32.gmra.mxu0 %v206
    %v790 = vpop.f32.mrf.mxu0
    %v791 = vadd.f32 %v161, %v790
    %792 = vmatmul.f32.gmra.mxu0 %v209
    %v793 = vpop.f32.mrf.mxu0
    %v794 = vadd.f32 %v161, %v793
    %795 = vmatmul.f32.gmra.mxu0 %v212
    %v796 = vpop.f32.mrf.mxu0
    %v797 = vadd.f32 %v161, %v796
    %798 = vmatmul.f32.gmra.mxu0 %v215
    %v799 = vpop.f32.mrf.mxu0
    %v800 = vadd.f32 %v161, %v799
    %801 = vmatmul.f32.gmra.mxu0 %v218
    %v802 = vpop.f32.mrf.mxu0
    %v803 = vadd.f32 %v161, %v802
    %804 = vmatmul.f32.gmra.mxu0 %v221
    %v805 = vpop.f32.mrf.mxu0
    %v806 = vadd.f32 %v161, %v805
    %807 = vmatmul.f32.gmra.mxu0 %v224
    %v808 = vpop.f32.mrf.mxu0
    %v809 = vadd.f32 %v161, %v808
    %810 = vmatmul.f32.gmra.mxu0 %v227
    %v811 = vpop.f32.mrf.mxu0
    %v812 = vadd.f32 %v161, %v811
    %813 = vmatmul.f32.gmra.mxu0 %v230
    %v814 = vpop.f32.mrf.mxu0
    %v815 = vadd.f32 %v161, %v814
    %816 = vmatmul.f32.gmra.mxu0 %v233
    %v817 = vpop.f32.mrf.mxu0
    %v818 = vadd.f32 %v161, %v817
    %819 = vmatmul.f32.gmra.mxu0 %v236
    %v820 = vpop.f32.mrf.mxu0
    %v821 = vadd.f32 %v161, %v820
    %822 = vmatmul.f32.gmra.mxu0 %v239
    %v823 = vpop.f32.mrf.mxu0
    %v824 = vadd.f32 %v161, %v823
    %825 = vmatmul.f32.gmra.mxu0 %v242
    %v826 = vpop.f32.mrf.mxu0
    %v827 = vadd.f32 %v161, %v826
    %828 = vmatmul.f32.gmra.mxu0 %v245
    %v829 = vpop.f32.mrf.mxu0
    %v830 = vadd.f32 %v161, %v829
    %831 = vmatmul.f32.gmra.mxu0 %v248
    %v832 = vpop.f32.mrf.mxu0
    %v833 = vadd.f32 %v161, %v832
    %834 = vdwg.mxu0
    %835 = vmatpush.msra.mxu0 0.0
    %836 = vmatpush.msra.mxu0 0.0
    %837 = vmatpush.msra.mxu0 0.0
    %838 = vmatpush.msra.mxu0 0.0
    %839 = vmatpush.msra.mxu0 0.0
    %840 = vmatpush.msra.mxu0 0.0
    %841 = vmatpush.msra.mxu0 0.0
    %842 = vmatpush.msra.mxu0 0.0
    %843 = vmatpush.msra.mxu0 0.0
    %844 = vmatpush.msra.mxu0 0.0
    %845 = vmatpush.msra.mxu0 0.0
    %846 = vmatpush.msra.mxu0 0.0
    %847 = vmatpush.msra.mxu0 %v132
    %848 = vmatpush.msra.mxu0 %v108
    %849 = vmatpush.msra.mxu0 %v84
    %850 = vmatpush.msra.mxu0 %v60
    %851 = vmatmul.f32.gmra.mxu0 %v203
    %v852 = vpop.f32.mrf.mxu0
    %v853 = vadd.f32 %v162, %v852
    %854 = vmatmul.f32.gmra.mxu0 %v206
    %v855 = vpop.f32.mrf.mxu0
    %v856 = vadd.f32 %v162, %v855
    %857 = vmatmul.f32.gmra.mxu0 %v209
    %v858 = vpop.f32.mrf.mxu0
    %v859 = vadd.f32 %v162, %v858
    %860 = vmatmul.f32.gmra.mxu0 %v212
    %v861 = vpop.f32.mrf.mxu0
    %v862 = vadd.f32 %v162, %v861
    %863 = vmatmul.f32.gmra.mxu0 %v215
    %v864 = vpop.f32.mrf.mxu0
    %v865 = vadd.f32 %v162, %v864
    %866 = vmatmul.f32.gmra.mxu0 %v218
    %v867 = vpop.f32.mrf.mxu0
    %v868 = vadd.f32 %v162, %v867
    %869 = vmatmul.f32.gmra.mxu0 %v221
    %v870 = vpop.f32.mrf.mxu0
    %v871 = vadd.f32 %v162, %v870
    %872 = vmatmul.f32.gmra.mxu0 %v224
    %v873 = vpop.f32.mrf.mxu0
    %v874 = vadd.f32 %v162, %v873
    %875 = vmatmul.f32.gmra.mxu0 %v227
    %v876 = vpop.f32.mrf.mxu0
    %v877 = vadd.f32 %v162, %v876
    %878 = vmatmul.f32.gmra.mxu0 %v230
    %v879 = vpop.f32.mrf.mxu0
    %v880 = vadd.f32 %v162, %v879
    %881 = vmatmul.f32.gmra.mxu0 %v233
    %v882 = vpop.f32.mrf.mxu0
    %v883 = vadd.f32 %v162, %v882
    %884 = vmatmul.f32.gmra.mxu0 %v236
    %v885 = vpop.f32.mrf.mxu0
    %v886 = vadd.f32 %v162, %v885
    %887 = vmatmul.f32.gmra.mxu0 %v239
    %v888 = vpop.f32.mrf.mxu0
    %v889 = vadd.f32 %v162, %v888
    %890 = vmatmul.f32.gmra.mxu0 %v242
    %v891 = vpop.f32.mrf.mxu0
    %v892 = vadd.f32 %v162, %v891
    %893 = vmatmul.f32.gmra.mxu0 %v245
    %v894 = vpop.f32.mrf.mxu0
    %v895 = vadd.f32 %v162, %v894
    %896 = vmatmul.f32.gmra.mxu0 %v248
    %v897 = vpop.f32.mrf.mxu0
    %v898 = vadd.f32 %v162, %v897
    %899 = vdwg.mxu0
    %900 = vmatpush.msra.mxu0 0.0
    %901 = vmatpush.msra.mxu0 0.0
    %902 = vmatpush.msra.mxu0 0.0
    %903 = vmatpush.msra.mxu0 0.0
    %904 = vmatpush.msra.mxu0 0.0
    %905 = vmatpush.msra.mxu0 0.0
    %906 = vmatpush.msra.mxu0 0.0
    %907 = vmatpush.msra.mxu0 0.0
    %908 = vmatpush.msra.mxu0 0.0
    %909 = vmatpush.msra.mxu0 0.0
    %910 = vmatpush.msra.mxu0 0.0
    %911 = vmatpush.msra.mxu0 0.0
    %912 = vmatpush.msra.mxu0 %v133
    %913 = vmatpush.msra.mxu0 %v109
    %914 = vmatpush.msra.mxu0 %v85
    %915 = vmatpush.msra.mxu0 %v61
    %916 = vmatmul.f32.gmra.mxu0 %v203
    %v917 = vpop.f32.mrf.mxu0
    %v918 = vadd.f32 %v163, %v917
    %919 = vmatmul.f32.gmra.mxu0 %v206
    %v920 = vpop.f32.mrf.mxu0
    %v921 = vadd.f32 %v163, %v920
    %922 = vmatmul.f32.gmra.mxu0 %v209
    %v923 = vpop.f32.mrf.mxu0
    %v924 = vadd.f32 %v163, %v923
    %925 = vmatmul.f32.gmra.mxu0 %v212
    %v926 = vpop.f32.mrf.mxu0
    %v927 = vadd.f32 %v163, %v926
    %928 = vmatmul.f32.gmra.mxu0 %v215
    %v929 = vpop.f32.mrf.mxu0
    %v930 = vadd.f32 %v163, %v929
    %931 = vmatmul.f32.gmra.mxu0 %v218
    %v932 = vpop.f32.mrf.mxu0
    %v933 = vadd.f32 %v163, %v932
    %934 = vmatmul.f32.gmra.mxu0 %v221
    %v935 = vpop.f32.mrf.mxu0
    %v936 = vadd.f32 %v163, %v935
    %937 = vmatmul.f32.gmra.mxu0 %v224
    %v938 = vpop.f32.mrf.mxu0
    %v939 = vadd.f32 %v163, %v938
    %940 = vmatmul.f32.gmra.mxu0 %v227
    %v941 = vpop.f32.mrf.mxu0
    %v942 = vadd.f32 %v163, %v941
    %943 = vmatmul.f32.gmra.mxu0 %v230
    %v944 = vpop.f32.mrf.mxu0
    %v945 = vadd.f32 %v163, %v944
    %946 = vmatmul.f32.gmra.mxu0 %v233
    %v947 = vpop.f32.mrf.mxu0
    %v948 = vadd.f32 %v163, %v947
    %949 = vmatmul.f32.gmra.mxu0 %v236
    %v950 = vpop.f32.mrf.mxu0
    %v951 = vadd.f32 %v163, %v950
    %952 = vmatmul.f32.gmra.mxu0 %v239
    %v953 = vpop.f32.mrf.mxu0
    %v954 = vadd.f32 %v163, %v953
    %955 = vmatmul.f32.gmra.mxu0 %v242
    %v956 = vpop.f32.mrf.mxu0
    %v957 = vadd.f32 %v163, %v956
    %958 = vmatmul.f32.gmra.mxu0 %v245
    %v959 = vpop.f32.mrf.mxu0
    %v960 = vadd.f32 %v163, %v959
    %961 = vmatmul.f32.gmra.mxu0 %v248
    %v962 = vpop.f32.mrf.mxu0
    %v963 = vadd.f32 %v163, %v962
    %964 = vdwg.mxu0
    %965 = vmatpush.msra.mxu0 0.0
    %966 = vmatpush.msra.mxu0 0.0
    %967 = vmatpush.msra.mxu0 0.0
    %968 = vmatpush.msra.mxu0 0.0
    %969 = vmatpush.msra.mxu0 0.0
    %970 = vmatpush.msra.mxu0 0.0
    %971 = vmatpush.msra.mxu0 0.0
    %972 = vmatpush.msra.mxu0 0.0
    %973 = vmatpush.msra.mxu0 0.0
    %974 = vmatpush.msra.mxu0 0.0
    %975 = vmatpush.msra.mxu0 0.0
    %976 = vmatpush.msra.mxu0 0.0
    %977 = vmatpush.msra.mxu0 %v134
    %978 = vmatpush.msra.mxu0 %v110
    %979 = vmatpush.msra.mxu0 %v86
    %980 = vmatpush.msra.mxu0 %v62
    %981 = vmatmul.f32.gmra.mxu0 %v203
    %v982 = vpop.f32.mrf.mxu0
    %v983 = vadd.f32 %v164, %v982
    %984 = vmatmul.f32.gmra.mxu0 %v206
    %v985 = vpop.f32.mrf.mxu0
    %v986 = vadd.f32 %v164, %v985
    %987 = vmatmul.f32.gmra.mxu0 %v209
    %v988 = vpop.f32.mrf.mxu0
    %v989 = vadd.f32 %v164, %v988
    %990 = vmatmul.f32.gmra.mxu0 %v212
    %v991 = vpop.f32.mrf.mxu0
    %v992 = vadd.f32 %v164, %v991
    %993 = vmatmul.f32.gmra.mxu0 %v215
    %v994 = vpop.f32.mrf.mxu0
    %v995 = vadd.f32 %v164, %v994
    %996 = vmatmul.f32.gmra.mxu0 %v218
    %v997 = vpop.f32.mrf.mxu0
    %v998 = vadd.f32 %v164, %v997
    %999 = vmatmul.f32.gmra.mxu0 %v221
    %v1000 = vpop.f32.mrf.mxu0
    %v1001 = vadd.f32 %v164, %v1000
    %1002 = vmatmul.f32.gmra.mxu0 %v224
    %v1003 = vpop.f32.mrf.mxu0
    %v1004 = vadd.f32 %v164, %v1003
    %1005 = vmatmul.f32.gmra.mxu0 %v227
    %v1006 = vpop.f32.mrf.mxu0
    %v1007 = vadd.f32 %v164, %v1006
    %1008 = vmatmul.f32.gmra.mxu0 %v230
    %v1009 = vpop.f32.mrf.mxu0
    %v1010 = vadd.f32 %v164, %v1009
    %1011 = vmatmul.f32.gmra.mxu0 %v233
    %v1012 = vpop.f32.mrf.mxu0
    %v1013 = vadd.f32 %v164, %v1012
    %1014 = vmatmul.f32.gmra.mxu0 %v236
    %v1015 = vpop.f32.mrf.mxu0
    %v1016 = vadd.f32 %v164, %v1015
    %1017 = vmatmul.f32.gmra.mxu0 %v239
    %v1018 = vpop.f32.mrf.mxu0
    %v1019 = vadd.f32 %v164, %v1018
    %1020 = vmatmul.f32.gmra.mxu0 %v242
    %v1021 = vpop.f32.mrf.mxu0
    %v1022 = vadd.f32 %v164, %v1021
    %1023 = vmatmul.f32.gmra.mxu0 %v245
    %v1024 = vpop.f32.mrf.mxu0
    %v1025 = vadd.f32 %v164, %v1024
    %1026 = vmatmul.f32.gmra.mxu0 %v248
    %v1027 = vpop.f32.mrf.mxu0
    %v1028 = vadd.f32 %v164, %v1027
    %1029 = vdwg.mxu0
    %1030 = vmatpush.msra.mxu0 0.0
    %1031 = vmatpush.msra.mxu0 0.0
    %1032 = vmatpush.msra.mxu0 0.0
    %1033 = vmatpush.msra.mxu0 0.0
    %1034 = vmatpush.msra.mxu0 0.0
    %1035 = vmatpush.msra.mxu0 0.0
    %1036 = vmatpush.msra.mxu0 0.0
    %1037 = vmatpush.msra.mxu0 0.0
    %1038 = vmatpush.msra.mxu0 0.0
    %1039 = vmatpush.msra.mxu0 0.0
    %1040 = vmatpush.msra.mxu0 0.0
    %1041 = vmatpush.msra.mxu0 0.0
    %1042 = vmatpush.msra.mxu0 %v135
    %1043 = vmatpush.msra.mxu0 %v111
    %1044 = vmatpush.msra.mxu0 %v87
    %1045 = vmatpush.msra.mxu0 %v63
    %1046 = vmatmul.f32.gmra.mxu0 %v203
    %v1047 = vpop.f32.mrf.mxu0
    %v1048 = vadd.f32 %v165, %v1047
    %1049 = vmatmul.f32.gmra.mxu0 %v206
    %v1050 = vpop.f32.mrf.mxu0
    %v1051 = vadd.f32 %v165, %v1050
    %1052 = vmatmul.f32.gmra.mxu0 %v209
    %v1053 = vpop.f32.mrf.mxu0
    %v1054 = vadd.f32 %v165, %v1053
    %1055 = vmatmul.f32.gmra.mxu0 %v212
    %v1056 = vpop.f32.mrf.mxu0
    %v1057 = vadd.f32 %v165, %v1056
    %1058 = vmatmul.f32.gmra.mxu0 %v215
    %v1059 = vpop.f32.mrf.mxu0
    %v1060 = vadd.f32 %v165, %v1059
    %1061 = vmatmul.f32.gmra.mxu0 %v218
    %v1062 = vpop.f32.mrf.mxu0
    %v1063 = vadd.f32 %v165, %v1062
    %1064 = vmatmul.f32.gmra.mxu0 %v221
    %v1065 = vpop.f32.mrf.mxu0
    %v1066 = vadd.f32 %v165, %v1065
    %1067 = vmatmul.f32.gmra.mxu0 %v224
    %v1068 = vpop.f32.mrf.mxu0
    %v1069 = vadd.f32 %v165, %v1068
    %1070 = vmatmul.f32.gmra.mxu0 %v227
    %v1071 = vpop.f32.mrf.mxu0
    %v1072 = vadd.f32 %v165, %v1071
    %1073 = vmatmul.f32.gmra.mxu0 %v230
    %v1074 = vpop.f32.mrf.mxu0
    %v1075 = vadd.f32 %v165, %v1074
    %1076 = vmatmul.f32.gmra.mxu0 %v233
    %v1077 = vpop.f32.mrf.mxu0
    %v1078 = vadd.f32 %v165, %v1077
    %1079 = vmatmul.f32.gmra.mxu0 %v236
    %v1080 = vpop.f32.mrf.mxu0
    %v1081 = vadd.f32 %v165, %v1080
    %1082 = vmatmul.f32.gmra.mxu0 %v239
    %v1083 = vpop.f32.mrf.mxu0
    %v1084 = vadd.f32 %v165, %v1083
    %1085 = vmatmul.f32.gmra.mxu0 %v242
    %v1086 = vpop.f32.mrf.mxu0
    %v1087 = vadd.f32 %v165, %v1086
    %1088 = vmatmul.f32.gmra.mxu0 %v245
    %v1089 = vpop.f32.mrf.mxu0
    %v1090 = vadd.f32 %v165, %v1089
    %1091 = vmatmul.f32.gmra.mxu0 %v248
    %v1092 = vpop.f32.mrf.mxu0
    %v1093 = vadd.f32 %v165, %v1092
    %1094 = vdwg.mxu0
    %1095 = vmatpush.msra.mxu0 0.0
    %1096 = vmatpush.msra.mxu0 0.0
    %1097 = vmatpush.msra.mxu0 0.0
    %1098 = vmatpush.msra.mxu0 0.0
    %1099 = vmatpush.msra.mxu0 0.0
    %1100 = vmatpush.msra.mxu0 0.0
    %1101 = vmatpush.msra.mxu0 0.0
    %1102 = vmatpush.msra.mxu0 0.0
    %1103 = vmatpush.msra.mxu0 0.0
    %1104 = vmatpush.msra.mxu0 0.0
    %1105 = vmatpush.msra.mxu0 0.0
    %1106 = vmatpush.msra.mxu0 0.0
    %1107 = vmatpush.msra.mxu0 %v136
    %1108 = vmatpush.msra.mxu0 %v112
    %1109 = vmatpush.msra.mxu0 %v88
    %1110 = vmatpush.msra.mxu0 %v64
    %1111 = vmatmul.f32.gmra.mxu0 %v203
    %v1112 = vpop.f32.mrf.mxu0
    %v1113 = vadd.f32 %v166, %v1112
    %1114 = vmatmul.f32.gmra.mxu0 %v206
    %v1115 = vpop.f32.mrf.mxu0
    %v1116 = vadd.f32 %v166, %v1115
    %1117 = vmatmul.f32.gmra.mxu0 %v209
    %v1118 = vpop.f32.mrf.mxu0
    %v1119 = vadd.f32 %v166, %v1118
    %1120 = vmatmul.f32.gmra.mxu0 %v212
    %v1121 = vpop.f32.mrf.mxu0
    %v1122 = vadd.f32 %v166, %v1121
    %1123 = vmatmul.f32.gmra.mxu0 %v215
    %v1124 = vpop.f32.mrf.mxu0
    %v1125 = vadd.f32 %v166, %v1124
    %1126 = vmatmul.f32.gmra.mxu0 %v218
    %v1127 = vpop.f32.mrf.mxu0
    %v1128 = vadd.f32 %v166, %v1127
    %1129 = vmatmul.f32.gmra.mxu0 %v221
    %v1130 = vpop.f32.mrf.mxu0
    %v1131 = vadd.f32 %v166, %v1130
    %1132 = vmatmul.f32.gmra.mxu0 %v224
    %v1133 = vpop.f32.mrf.mxu0
    %v1134 = vadd.f32 %v166, %v1133
    %1135 = vmatmul.f32.gmra.mxu0 %v227
    %v1136 = vpop.f32.mrf.mxu0
    %v1137 = vadd.f32 %v166, %v1136
    %1138 = vmatmul.f32.gmra.mxu0 %v230
    %v1139 = vpop.f32.mrf.mxu0
    %v1140 = vadd.f32 %v166, %v1139
    %1141 = vmatmul.f32.gmra.mxu0 %v233
    %v1142 = vpop.f32.mrf.mxu0
    %v1143 = vadd.f32 %v166, %v1142
    %1144 = vmatmul.f32.gmra.mxu0 %v236
    %v1145 = vpop.f32.mrf.mxu0
    %v1146 = vadd.f32 %v166, %v1145
    %1147 = vmatmul.f32.gmra.mxu0 %v239
    %v1148 = vpop.f32.mrf.mxu0
    %v1149 = vadd.f32 %v166, %v1148
    %1150 = vmatmul.f32.gmra.mxu0 %v242
    %v1151 = vpop.f32.mrf.mxu0
    %v1152 = vadd.f32 %v166, %v1151
    %1153 = vmatmul.f32.gmra.mxu0 %v245
    %v1154 = vpop.f32.mrf.mxu0
    %v1155 = vadd.f32 %v166, %v1154
    %1156 = vmatmul.f32.gmra.mxu0 %v248
    %v1157 = vpop.f32.mrf.mxu0
    %v1158 = vadd.f32 %v166, %v1157
    %1159 = vdwg.mxu0
    %1160 = vmatpush.msra.mxu0 0.0
    %1161 = vmatpush.msra.mxu0 0.0
    %1162 = vmatpush.msra.mxu0 0.0
    %1163 = vmatpush.msra.mxu0 0.0
    %1164 = vmatpush.msra.mxu0 0.0
    %1165 = vmatpush.msra.mxu0 0.0
    %1166 = vmatpush.msra.mxu0 0.0
    %1167 = vmatpush.msra.mxu0 0.0
    %1168 = vmatpush.msra.mxu0 0.0
    %1169 = vmatpush.msra.mxu0 0.0
    %1170 = vmatpush.msra.mxu0 0.0
    %1171 = vmatpush.msra.mxu0 0.0
    %1172 = vmatpush.msra.mxu0 %v137
    %1173 = vmatpush.msra.mxu0 %v113
    %1174 = vmatpush.msra.mxu0 %v89
    %1175 = vmatpush.msra.mxu0 %v65
    %1176 = vmatmul.f32.gmra.mxu0 %v203
    %v1177 = vpop.f32.mrf.mxu0
    %v1178 = vadd.f32 %v167, %v1177
    %1179 = vmatmul.f32.gmra.mxu0 %v206
    %v1180 = vpop.f32.mrf.mxu0
    %v1181 = vadd.f32 %v167, %v1180
    %1182 = vmatmul.f32.gmra.mxu0 %v209
    %v1183 = vpop.f32.mrf.mxu0
    %v1184 = vadd.f32 %v167, %v1183
    %1185 = vmatmul.f32.gmra.mxu0 %v212
    %v1186 = vpop.f32.mrf.mxu0
    %v1187 = vadd.f32 %v167, %v1186
    %1188 = vmatmul.f32.gmra.mxu0 %v215
    %v1189 = vpop.f32.mrf.mxu0
    %v1190 = vadd.f32 %v167, %v1189
    %1191 = vmatmul.f32.gmra.mxu0 %v218
    %v1192 = vpop.f32.mrf.mxu0
    %v1193 = vadd.f32 %v167, %v1192
    %1194 = vmatmul.f32.gmra.mxu0 %v221
    %v1195 = vpop.f32.mrf.mxu0
    %v1196 = vadd.f32 %v167, %v1195
    %1197 = vmatmul.f32.gmra.mxu0 %v224
    %v1198 = vpop.f32.mrf.mxu0
    %v1199 = vadd.f32 %v167, %v1198
    %1200 = vmatmul.f32.gmra.mxu0 %v227
    %v1201 = vpop.f32.mrf.mxu0
    %v1202 = vadd.f32 %v167, %v1201
    %1203 = vmatmul.f32.gmra.mxu0 %v230
    %v1204 = vpop.f32.mrf.mxu0
    %v1205 = vadd.f32 %v167, %v1204
    %1206 = vmatmul.f32.gmra.mxu0 %v233
    %v1207 = vpop.f32.mrf.mxu0
    %v1208 = vadd.f32 %v167, %v1207
    %1209 = vmatmul.f32.gmra.mxu0 %v236
    %v1210 = vpop.f32.mrf.mxu0
    %v1211 = vadd.f32 %v167, %v1210
    %1212 = vmatmul.f32.gmra.mxu0 %v239
    %v1213 = vpop.f32.mrf.mxu0
    %v1214 = vadd.f32 %v167, %v1213
    %1215 = vmatmul.f32.gmra.mxu0 %v242
    %v1216 = vpop.f32.mrf.mxu0
    %v1217 = vadd.f32 %v167, %v1216
    %1218 = vmatmul.f32.gmra.mxu0 %v245
    %v1219 = vpop.f32.mrf.mxu0
    %v1220 = vadd.f32 %v167, %v1219
    %1221 = vmatmul.f32.gmra.mxu0 %v248
    %v1222 = vpop.f32.mrf.mxu0
    %v1223 = vadd.f32 %v167, %v1222
    %1224 = vdwg.mxu0
    %1225 = vmatpush.msra.mxu0 0.0
    %1226 = vmatpush.msra.mxu0 0.0
    %1227 = vmatpush.msra.mxu0 0.0
    %1228 = vmatpush.msra.mxu0 0.0
    %1229 = vmatpush.msra.mxu0 0.0
    %1230 = vmatpush.msra.mxu0 0.0
    %1231 = vmatpush.msra.mxu0 0.0
    %1232 = vmatpush.msra.mxu0 0.0
    %1233 = vmatpush.msra.mxu0 0.0
    %1234 = vmatpush.msra.mxu0 0.0
    %1235 = vmatpush.msra.mxu0 0.0
    %1236 = vmatpush.msra.mxu0 0.0
    %1237 = vmatpush.msra.mxu0 %v138
    %1238 = vmatpush.msra.mxu0 %v114
    %1239 = vmatpush.msra.mxu0 %v90
    %1240 = vmatpush.msra.mxu0 %v66
    %1241 = vmatmul.f32.gmra.mxu0 %v203
    %v1242 = vpop.f32.mrf.mxu0
    %v1243 = vadd.f32 %v168, %v1242
    %1244 = vmatmul.f32.gmra.mxu0 %v206
    %v1245 = vpop.f32.mrf.mxu0
    %v1246 = vadd.f32 %v168, %v1245
    %1247 = vmatmul.f32.gmra.mxu0 %v209
    %v1248 = vpop.f32.mrf.mxu0
    %v1249 = vadd.f32 %v168, %v1248
    %1250 = vmatmul.f32.gmra.mxu0 %v212
    %v1251 = vpop.f32.mrf.mxu0
    %v1252 = vadd.f32 %v168, %v1251
    %1253 = vmatmul.f32.gmra.mxu0 %v215
    %v1254 = vpop.f32.mrf.mxu0
    %v1255 = vadd.f32 %v168, %v1254
    %1256 = vmatmul.f32.gmra.mxu0 %v218
    %v1257 = vpop.f32.mrf.mxu0
    %v1258 = vadd.f32 %v168, %v1257
    %1259 = vmatmul.f32.gmra.mxu0 %v221
    %v1260 = vpop.f32.mrf.mxu0
    %v1261 = vadd.f32 %v168, %v1260
    %1262 = vmatmul.f32.gmra.mxu0 %v224
    %v1263 = vpop.f32.mrf.mxu0
    %v1264 = vadd.f32 %v168, %v1263
    %1265 = vmatmul.f32.gmra.mxu0 %v227
    %v1266 = vpop.f32.mrf.mxu0
    %v1267 = vadd.f32 %v168, %v1266
    %1268 = vmatmul.f32.gmra.mxu0 %v230
    %v1269 = vpop.f32.mrf.mxu0
    %v1270 = vadd.f32 %v168, %v1269
    %1271 = vmatmul.f32.gmra.mxu0 %v233
    %v1272 = vpop.f32.mrf.mxu0
    %v1273 = vadd.f32 %v168, %v1272
    %1274 = vmatmul.f32.gmra.mxu0 %v236
    %v1275 = vpop.f32.mrf.mxu0
    %v1276 = vadd.f32 %v168, %v1275
    %1277 = vmatmul.f32.gmra.mxu0 %v239
    %v1278 = vpop.f32.mrf.mxu0
    %v1279 = vadd.f32 %v168, %v1278
    %1280 = vmatmul.f32.gmra.mxu0 %v242
    %v1281 = vpop.f32.mrf.mxu0
    %v1282 = vadd.f32 %v168, %v1281
    %1283 = vmatmul.f32.gmra.mxu0 %v245
    %v1284 = vpop.f32.mrf.mxu0
    %v1285 = vadd.f32 %v168, %v1284
    %1286 = vmatmul.f32.gmra.mxu0 %v248
    %v1287 = vpop.f32.mrf.mxu0
    %v1288 = vadd.f32 %v168, %v1287
    %1289 = vdwg.mxu0
    %1290 = vmatpush.msra.mxu0 0.0
    %1291 = vmatpush.msra.mxu0 0.0
    %1292 = vmatpush.msra.mxu0 0.0
    %1293 = vmatpush.msra.mxu0 0.0
    %1294 = vmatpush.msra.mxu0 0.0
    %1295 = vmatpush.msra.mxu0 0.0
    %1296 = vmatpush.msra.mxu0 0.0
    %1297 = vmatpush.msra.mxu0 0.0
    %1298 = vmatpush.msra.mxu0 0.0
    %1299 = vmatpush.msra.mxu0 0.0
    %1300 = vmatpush.msra.mxu0 0.0
    %1301 = vmatpush.msra.mxu0 0.0
    %1302 = vmatpush.msra.mxu0 %v139
    %1303 = vmatpush.msra.mxu0 %v115
    %1304 = vmatpush.msra.mxu0 %v91
    %1305 = vmatpush.msra.mxu0 %v67
    %1306 = vmatmul.f32.gmra.mxu0 %v203
    %v1307 = vpop.f32.mrf.mxu0
    %v1308 = vadd.f32 %v169, %v1307
    %1309 = vmatmul.f32.gmra.mxu0 %v206
    %v1310 = vpop.f32.mrf.mxu0
    %v1311 = vadd.f32 %v169, %v1310
    %1312 = vmatmul.f32.gmra.mxu0 %v209
    %v1313 = vpop.f32.mrf.mxu0
    %v1314 = vadd.f32 %v169, %v1313
    %1315 = vmatmul.f32.gmra.mxu0 %v212
    %v1316 = vpop.f32.mrf.mxu0
    %v1317 = vadd.f32 %v169, %v1316
    %1318 = vmatmul.f32.gmra.mxu0 %v215
    %v1319 = vpop.f32.mrf.mxu0
    %v1320 = vadd.f32 %v169, %v1319
    %1321 = vmatmul.f32.gmra.mxu0 %v218
    %v1322 = vpop.f32.mrf.mxu0
    %v1323 = vadd.f32 %v169, %v1322
    %1324 = vmatmul.f32.gmra.mxu0 %v221
    %v1325 = vpop.f32.mrf.mxu0
    %v1326 = vadd.f32 %v169, %v1325
    %1327 = vmatmul.f32.gmra.mxu0 %v224
    %v1328 = vpop.f32.mrf.mxu0
    %v1329 = vadd.f32 %v169, %v1328
    %1330 = vmatmul.f32.gmra.mxu0 %v227
    %v1331 = vpop.f32.mrf.mxu0
    %v1332 = vadd.f32 %v169, %v1331
    %1333 = vmatmul.f32.gmra.mxu0 %v230
    %v1334 = vpop.f32.mrf.mxu0
    %v1335 = vadd.f32 %v169, %v1334
    %1336 = vmatmul.f32.gmra.mxu0 %v233
    %v1337 = vpop.f32.mrf.mxu0
    %v1338 = vadd.f32 %v169, %v1337
    %1339 = vmatmul.f32.gmra.mxu0 %v236
    %v1340 = vpop.f32.mrf.mxu0
    %v1341 = vadd.f32 %v169, %v1340
    %1342 = vmatmul.f32.gmra.mxu0 %v239
    %v1343 = vpop.f32.mrf.mxu0
    %v1344 = vadd.f32 %v169, %v1343
    %1345 = vmatmul.f32.gmra.mxu0 %v242
    %v1346 = vpop.f32.mrf.mxu0
    %v1347 = vadd.f32 %v169, %v1346
    %1348 = vmatmul.f32.gmra.mxu0 %v245
    %v1349 = vpop.f32.mrf.mxu0
    %v1350 = vadd.f32 %v169, %v1349
    %1351 = vmatmul.f32.gmra.mxu0 %v248
    %v1352 = vpop.f32.mrf.mxu0
    %v1353 = vadd.f32 %v169, %v1352
    %1354 = vdwg.mxu0
    %1355 = vmatpush.msra.mxu0 0.0
    %1356 = vmatpush.msra.mxu0 0.0
    %1357 = vmatpush.msra.mxu0 0.0
    %1358 = vmatpush.msra.mxu0 0.0
    %1359 = vmatpush.msra.mxu0 0.0
    %1360 = vmatpush.msra.mxu0 0.0
    %1361 = vmatpush.msra.mxu0 0.0
    %1362 = vmatpush.msra.mxu0 0.0
    %1363 = vmatpush.msra.mxu0 0.0
    %1364 = vmatpush.msra.mxu0 0.0
    %1365 = vmatpush.msra.mxu0 0.0
    %1366 = vmatpush.msra.mxu0 0.0
    %1367 = vmatpush.msra.mxu0 %v140
    %1368 = vmatpush.msra.mxu0 %v116
    %1369 = vmatpush.msra.mxu0 %v92
    %1370 = vmatpush.msra.mxu0 %v68
    %1371 = vmatmul.f32.gmra.mxu0 %v203
    %v1372 = vpop.f32.mrf.mxu0
    %v1373 = vadd.f32 %v170, %v1372
    %1374 = vmatmul.f32.gmra.mxu0 %v206
    %v1375 = vpop.f32.mrf.mxu0
    %v1376 = vadd.f32 %v170, %v1375
    %1377 = vmatmul.f32.gmra.mxu0 %v209
    %v1378 = vpop.f32.mrf.mxu0
    %v1379 = vadd.f32 %v170, %v1378
    %1380 = vmatmul.f32.gmra.mxu0 %v212
    %v1381 = vpop.f32.mrf.mxu0
    %v1382 = vadd.f32 %v170, %v1381
    %1383 = vmatmul.f32.gmra.mxu0 %v215
    %v1384 = vpop.f32.mrf.mxu0
    %v1385 = vadd.f32 %v170, %v1384
    %1386 = vmatmul.f32.gmra.mxu0 %v218
    %v1387 = vpop.f32.mrf.mxu0
    %v1388 = vadd.f32 %v170, %v1387
    %1389 = vmatmul.f32.gmra.mxu0 %v221
    %v1390 = vpop.f32.mrf.mxu0
    %v1391 = vadd.f32 %v170, %v1390
    %1392 = vmatmul.f32.gmra.mxu0 %v224
    %v1393 = vpop.f32.mrf.mxu0
    %v1394 = vadd.f32 %v170, %v1393
    %1395 = vmatmul.f32.gmra.mxu0 %v227
    %v1396 = vpop.f32.mrf.mxu0
    %v1397 = vadd.f32 %v170, %v1396
    %1398 = vmatmul.f32.gmra.mxu0 %v230
    %v1399 = vpop.f32.mrf.mxu0
    %v1400 = vadd.f32 %v170, %v1399
    %1401 = vmatmul.f32.gmra.mxu0 %v233
    %v1402 = vpop.f32.mrf.mxu0
    %v1403 = vadd.f32 %v170, %v1402
    %1404 = vmatmul.f32.gmra.mxu0 %v236
    %v1405 = vpop.f32.mrf.mxu0
    %v1406 = vadd.f32 %v170, %v1405
    %1407 = vmatmul.f32.gmra.mxu0 %v239
    %v1408 = vpop.f32.mrf.mxu0
    %v1409 = vadd.f32 %v170, %v1408
    %1410 = vmatmul.f32.gmra.mxu0 %v242
    %v1411 = vpop.f32.mrf.mxu0
    %v1412 = vadd.f32 %v170, %v1411
    %1413 = vmatmul.f32.gmra.mxu0 %v245
    %v1414 = vpop.f32.mrf.mxu0
    %v1415 = vadd.f32 %v170, %v1414
    %1416 = vmatmul.f32.gmra.mxu0 %v248
    %v1417 = vpop.f32.mrf.mxu0
    %v1418 = vadd.f32 %v170, %v1417
    %1419 = vdwg.mxu0
    %1420 = vmatpush.msra.mxu0 0.0
    %1421 = vmatpush.msra.mxu0 0.0
    %1422 = vmatpush.msra.mxu0 0.0
    %1423 = vmatpush.msra.mxu0 0.0
    %1424 = vmatpush.msra.mxu0 0.0
    %1425 = vmatpush.msra.mxu0 0.0
    %1426 = vmatpush.msra.mxu0 0.0
    %1427 = vmatpush.msra.mxu0 0.0
    %1428 = vmatpush.msra.mxu0 0.0
    %1429 = vmatpush.msra.mxu0 0.0
    %1430 = vmatpush.msra.mxu0 0.0
    %1431 = vmatpush.msra.mxu0 0.0
    %1432 = vmatpush.msra.mxu0 %v141
    %1433 = vmatpush.msra.mxu0 %v117
    %1434 = vmatpush.msra.mxu0 %v93
    %1435 = vmatpush.msra.mxu0 %v69
    %1436 = vmatmul.f32.gmra.mxu0 %v203
    %v1437 = vpop.f32.mrf.mxu0
    %v1438 = vadd.f32 %v171, %v1437
    %1439 = vmatmul.f32.gmra.mxu0 %v206
    %v1440 = vpop.f32.mrf.mxu0
    %v1441 = vadd.f32 %v171, %v1440
    %1442 = vmatmul.f32.gmra.mxu0 %v209
    %v1443 = vpop.f32.mrf.mxu0
    %v1444 = vadd.f32 %v171, %v1443
    %1445 = vmatmul.f32.gmra.mxu0 %v212
    %v1446 = vpop.f32.mrf.mxu0
    %v1447 = vadd.f32 %v171, %v1446
    %1448 = vmatmul.f32.gmra.mxu0 %v215
    %v1449 = vpop.f32.mrf.mxu0
    %v1450 = vadd.f32 %v171, %v1449
    %1451 = vmatmul.f32.gmra.mxu0 %v218
    %v1452 = vpop.f32.mrf.mxu0
    %v1453 = vadd.f32 %v171, %v1452
    %1454 = vmatmul.f32.gmra.mxu0 %v221
    %v1455 = vpop.f32.mrf.mxu0
    %v1456 = vadd.f32 %v171, %v1455
    %1457 = vmatmul.f32.gmra.mxu0 %v224
    %v1458 = vpop.f32.mrf.mxu0
    %v1459 = vadd.f32 %v171, %v1458
    %1460 = vmatmul.f32.gmra.mxu0 %v227
    %v1461 = vpop.f32.mrf.mxu0
    %v1462 = vadd.f32 %v171, %v1461
    %1463 = vmatmul.f32.gmra.mxu0 %v230
    %v1464 = vpop.f32.mrf.mxu0
    %v1465 = vadd.f32 %v171, %v1464
    %1466 = vmatmul.f32.gmra.mxu0 %v233
    %v1467 = vpop.f32.mrf.mxu0
    %v1468 = vadd.f32 %v171, %v1467
    %1469 = vmatmul.f32.gmra.mxu0 %v236
    %v1470 = vpop.f32.mrf.mxu0
    %v1471 = vadd.f32 %v171, %v1470
    %1472 = vmatmul.f32.gmra.mxu0 %v239
    %v1473 = vpop.f32.mrf.mxu0
    %v1474 = vadd.f32 %v171, %v1473
    %1475 = vmatmul.f32.gmra.mxu0 %v242
    %v1476 = vpop.f32.mrf.mxu0
    %v1477 = vadd.f32 %v171, %v1476
    %1478 = vmatmul.f32.gmra.mxu0 %v245
    %v1479 = vpop.f32.mrf.mxu0
    %v1480 = vadd.f32 %v171, %v1479
    %1481 = vmatmul.f32.gmra.mxu0 %v248
    %v1482 = vpop.f32.mrf.mxu0
    %v1483 = vadd.f32 %v171, %v1482
    %1484 = vdwg.mxu0
    %1485 = vmatpush.msra.mxu0 0.0
    %1486 = vmatpush.msra.mxu0 0.0
    %1487 = vmatpush.msra.mxu0 0.0
    %1488 = vmatpush.msra.mxu0 0.0
    %1489 = vmatpush.msra.mxu0 0.0
    %1490 = vmatpush.msra.mxu0 0.0
    %1491 = vmatpush.msra.mxu0 0.0
    %1492 = vmatpush.msra.mxu0 0.0
    %1493 = vmatpush.msra.mxu0 0.0
    %1494 = vmatpush.msra.mxu0 0.0
    %1495 = vmatpush.msra.mxu0 0.0
    %1496 = vmatpush.msra.mxu0 0.0
    %1497 = vmatpush.msra.mxu0 %v142
    %1498 = vmatpush.msra.mxu0 %v118
    %1499 = vmatpush.msra.mxu0 %v94
    %1500 = vmatpush.msra.mxu0 %v70
    %1501 = vmatmul.f32.gmra.mxu0 %v203
    %v1502 = vpop.f32.mrf.mxu0
    %v1503 = vadd.f32 %v172, %v1502
    %1504 = vmatmul.f32.gmra.mxu0 %v206
    %v1505 = vpop.f32.mrf.mxu0
    %v1506 = vadd.f32 %v172, %v1505
    %1507 = vmatmul.f32.gmra.mxu0 %v209
    %v1508 = vpop.f32.mrf.mxu0
    %v1509 = vadd.f32 %v172, %v1508
    %1510 = vmatmul.f32.gmra.mxu0 %v212
    %v1511 = vpop.f32.mrf.mxu0
    %v1512 = vadd.f32 %v172, %v1511
    %1513 = vmatmul.f32.gmra.mxu0 %v215
    %v1514 = vpop.f32.mrf.mxu0
    %v1515 = vadd.f32 %v172, %v1514
    %1516 = vmatmul.f32.gmra.mxu0 %v218
    %v1517 = vpop.f32.mrf.mxu0
    %v1518 = vadd.f32 %v172, %v1517
    %1519 = vmatmul.f32.gmra.mxu0 %v221
    %v1520 = vpop.f32.mrf.mxu0
    %v1521 = vadd.f32 %v172, %v1520
    %1522 = vmatmul.f32.gmra.mxu0 %v224
    %v1523 = vpop.f32.mrf.mxu0
    %v1524 = vadd.f32 %v172, %v1523
    %1525 = vmatmul.f32.gmra.mxu0 %v227
    %v1526 = vpop.f32.mrf.mxu0
    %v1527 = vadd.f32 %v172, %v1526
    %1528 = vmatmul.f32.gmra.mxu0 %v230
    %v1529 = vpop.f32.mrf.mxu0
    %v1530 = vadd.f32 %v172, %v1529
    %1531 = vmatmul.f32.gmra.mxu0 %v233
    %v1532 = vpop.f32.mrf.mxu0
    %v1533 = vadd.f32 %v172, %v1532
    %1534 = vmatmul.f32.gmra.mxu0 %v236
    %v1535 = vpop.f32.mrf.mxu0
    %v1536 = vadd.f32 %v172, %v1535
    %1537 = vmatmul.f32.gmra.mxu0 %v239
    %v1538 = vpop.f32.mrf.mxu0
    %v1539 = vadd.f32 %v172, %v1538
    %1540 = vmatmul.f32.gmra.mxu0 %v242
    %v1541 = vpop.f32.mrf.mxu0
    %v1542 = vadd.f32 %v172, %v1541
    %1543 = vmatmul.f32.gmra.mxu0 %v245
    %v1544 = vpop.f32.mrf.mxu0
    %v1545 = vadd.f32 %v172, %v1544
    %1546 = vmatmul.f32.gmra.mxu0 %v248
    %v1547 = vpop.f32.mrf.mxu0
    %v1548 = vadd.f32 %v172, %v1547
    %1549 = vdwg.mxu0
    %1550 = vmatpush.msra.mxu0 0.0
    %1551 = vmatpush.msra.mxu0 0.0
    %1552 = vmatpush.msra.mxu0 0.0
    %1553 = vmatpush.msra.mxu0 0.0
    %1554 = vmatpush.msra.mxu0 0.0
    %1555 = vmatpush.msra.mxu0 0.0
    %1556 = vmatpush.msra.mxu0 0.0
    %1557 = vmatpush.msra.mxu0 0.0
    %1558 = vmatpush.msra.mxu0 0.0
    %1559 = vmatpush.msra.mxu0 0.0
    %1560 = vmatpush.msra.mxu0 0.0
    %1561 = vmatpush.msra.mxu0 0.0
    %1562 = vmatpush.msra.mxu0 %v143
    %1563 = vmatpush.msra.mxu0 %v119
    %1564 = vmatpush.msra.mxu0 %v95
    %1565 = vmatpush.msra.mxu0 %v71
    %1566 = vmatmul.f32.gmra.mxu0 %v203
    %v1567 = vpop.f32.mrf.mxu0
    %v1568 = vadd.f32 %v173, %v1567
    %1569 = vmatmul.f32.gmra.mxu0 %v206
    %v1570 = vpop.f32.mrf.mxu0
    %v1571 = vadd.f32 %v173, %v1570
    %1572 = vmatmul.f32.gmra.mxu0 %v209
    %v1573 = vpop.f32.mrf.mxu0
    %v1574 = vadd.f32 %v173, %v1573
    %1575 = vmatmul.f32.gmra.mxu0 %v212
    %v1576 = vpop.f32.mrf.mxu0
    %v1577 = vadd.f32 %v173, %v1576
    %1578 = vmatmul.f32.gmra.mxu0 %v215
    %v1579 = vpop.f32.mrf.mxu0
    %v1580 = vadd.f32 %v173, %v1579
    %1581 = vmatmul.f32.gmra.mxu0 %v218
    %v1582 = vpop.f32.mrf.mxu0
    %v1583 = vadd.f32 %v173, %v1582
    %1584 = vmatmul.f32.gmra.mxu0 %v221
    %v1585 = vpop.f32.mrf.mxu0
    %v1586 = vadd.f32 %v173, %v1585
    %1587 = vmatmul.f32.gmra.mxu0 %v224
    %v1588 = vpop.f32.mrf.mxu0
    %v1589 = vadd.f32 %v173, %v1588
    %1590 = vmatmul.f32.gmra.mxu0 %v227
    %v1591 = vpop.f32.mrf.mxu0
    %v1592 = vadd.f32 %v173, %v1591
    %1593 = vmatmul.f32.gmra.mxu0 %v230
    %v1594 = vpop.f32.mrf.mxu0
    %v1595 = vadd.f32 %v173, %v1594
    %1596 = vmatmul.f32.gmra.mxu0 %v233
    %v1597 = vpop.f32.mrf.mxu0
    %v1598 = vadd.f32 %v173, %v1597
    %1599 = vmatmul.f32.gmra.mxu0 %v236
    %v1600 = vpop.f32.mrf.mxu0
    %v1601 = vadd.f32 %v173, %v1600
    %1602 = vmatmul.f32.gmra.mxu0 %v239
    %v1603 = vpop.f32.mrf.mxu0
    %v1604 = vadd.f32 %v173, %v1603
    %1605 = vmatmul.f32.gmra.mxu0 %v242
    %v1606 = vpop.f32.mrf.mxu0
    %v1607 = vadd.f32 %v173, %v1606
    %1608 = vmatmul.f32.gmra.mxu0 %v245
    %v1609 = vpop.f32.mrf.mxu0
    %v1610 = vadd.f32 %v173, %v1609
    %1611 = vmatmul.f32.gmra.mxu0 %v248
    %v1612 = vpop.f32.mrf.mxu0
    %v1613 = vadd.f32 %v173, %v1612
    %1614 = vdwg.mxu0
    %1615 = vmatpush.msra.mxu0 0.0
    %1616 = vmatpush.msra.mxu0 0.0
    %1617 = vmatpush.msra.mxu0 0.0
    %1618 = vmatpush.msra.mxu0 0.0
    %1619 = vmatpush.msra.mxu0 0.0
    %1620 = vmatpush.msra.mxu0 0.0
    %1621 = vmatpush.msra.mxu0 0.0
    %1622 = vmatpush.msra.mxu0 0.0
    %1623 = vmatpush.msra.mxu0 0.0
    %1624 = vmatpush.msra.mxu0 0.0
    %1625 = vmatpush.msra.mxu0 0.0
    %1626 = vmatpush.msra.mxu0 0.0
    %1627 = vmatpush.msra.mxu0 %v144
    %1628 = vmatpush.msra.mxu0 %v120
    %1629 = vmatpush.msra.mxu0 %v96
    %1630 = vmatpush.msra.mxu0 %v72
    %1631 = vmatmul.f32.gmra.mxu0 %v203
    %v1632 = vpop.f32.mrf.mxu0
    %v1633 = vadd.f32 %v174, %v1632
    %1634 = vmatmul.f32.gmra.mxu0 %v206
    %v1635 = vpop.f32.mrf.mxu0
    %v1636 = vadd.f32 %v174, %v1635
    %1637 = vmatmul.f32.gmra.mxu0 %v209
    %v1638 = vpop.f32.mrf.mxu0
    %v1639 = vadd.f32 %v174, %v1638
    %1640 = vmatmul.f32.gmra.mxu0 %v212
    %v1641 = vpop.f32.mrf.mxu0
    %v1642 = vadd.f32 %v174, %v1641
    %1643 = vmatmul.f32.gmra.mxu0 %v215
    %v1644 = vpop.f32.mrf.mxu0
    %v1645 = vadd.f32 %v174, %v1644
    %1646 = vmatmul.f32.gmra.mxu0 %v218
    %v1647 = vpop.f32.mrf.mxu0
    %v1648 = vadd.f32 %v174, %v1647
    %1649 = vmatmul.f32.gmra.mxu0 %v221
    %v1650 = vpop.f32.mrf.mxu0
    %v1651 = vadd.f32 %v174, %v1650
    %1652 = vmatmul.f32.gmra.mxu0 %v224
    %v1653 = vpop.f32.mrf.mxu0
    %v1654 = vadd.f32 %v174, %v1653
    %1655 = vmatmul.f32.gmra.mxu0 %v227
    %v1656 = vpop.f32.mrf.mxu0
    %v1657 = vadd.f32 %v174, %v1656
    %1658 = vmatmul.f32.gmra.mxu0 %v230
    %v1659 = vpop.f32.mrf.mxu0
    %v1660 = vadd.f32 %v174, %v1659
    %1661 = vmatmul.f32.gmra.mxu0 %v233
    %v1662 = vpop.f32.mrf.mxu0
    %v1663 = vadd.f32 %v174, %v1662
    %1664 = vmatmul.f32.gmra.mxu0 %v236
    %v1665 = vpop.f32.mrf.mxu0
    %v1666 = vadd.f32 %v174, %v1665
    %1667 = vmatmul.f32.gmra.mxu0 %v239
    %v1668 = vpop.f32.mrf.mxu0
    %v1669 = vadd.f32 %v174, %v1668
    %1670 = vmatmul.f32.gmra.mxu0 %v242
    %v1671 = vpop.f32.mrf.mxu0
    %v1672 = vadd.f32 %v174, %v1671
    %1673 = vmatmul.f32.gmra.mxu0 %v245
    %v1674 = vpop.f32.mrf.mxu0
    %v1675 = vadd.f32 %v174, %v1674
    %1676 = vmatmul.f32.gmra.mxu0 %v248
    %v1677 = vpop.f32.mrf.mxu0
    %v1678 = vadd.f32 %v174, %v1677
    %1679 = vdwg.mxu0
    %1680 = vmatpush.msra.mxu0 0.0
    %1681 = vmatpush.msra.mxu0 0.0
    %1682 = vmatpush.msra.mxu0 0.0
    %1683 = vmatpush.msra.mxu0 0.0
    %1684 = vmatpush.msra.mxu0 0.0
    %1685 = vmatpush.msra.mxu0 0.0
    %1686 = vmatpush.msra.mxu0 0.0
    %1687 = vmatpush.msra.mxu0 0.0
    %1688 = vmatpush.msra.mxu0 0.0
    %1689 = vmatpush.msra.mxu0 0.0
    %1690 = vmatpush.msra.mxu0 0.0
    %1691 = vmatpush.msra.mxu0 0.0
    %1692 = vmatpush.msra.mxu0 %v145
    %1693 = vmatpush.msra.mxu0 %v121
    %1694 = vmatpush.msra.mxu0 %v97
    %1695 = vmatpush.msra.mxu0 %v73
    %1696 = vmatmul.f32.gmra.mxu0 %v203
    %v1697 = vpop.f32.mrf.mxu0
    %v1698 = vadd.f32 %v175, %v1697
    %1699 = vmatmul.f32.gmra.mxu0 %v206
    %v1700 = vpop.f32.mrf.mxu0
    %v1701 = vadd.f32 %v175, %v1700
    %1702 = vmatmul.f32.gmra.mxu0 %v209
    %v1703 = vpop.f32.mrf.mxu0
    %v1704 = vadd.f32 %v175, %v1703
    %1705 = vmatmul.f32.gmra.mxu0 %v212
    %v1706 = vpop.f32.mrf.mxu0
    %v1707 = vadd.f32 %v175, %v1706
    %1708 = vmatmul.f32.gmra.mxu0 %v215
    %v1709 = vpop.f32.mrf.mxu0
    %v1710 = vadd.f32 %v175, %v1709
    %1711 = vmatmul.f32.gmra.mxu0 %v218
    %v1712 = vpop.f32.mrf.mxu0
    %v1713 = vadd.f32 %v175, %v1712
    %1714 = vmatmul.f32.gmra.mxu0 %v221
    %v1715 = vpop.f32.mrf.mxu0
    %v1716 = vadd.f32 %v175, %v1715
    %1717 = vmatmul.f32.gmra.mxu0 %v224
    %v1718 = vpop.f32.mrf.mxu0
    %v1719 = vadd.f32 %v175, %v1718
    %1720 = vmatmul.f32.gmra.mxu0 %v227
    %v1721 = vpop.f32.mrf.mxu0
    %v1722 = vadd.f32 %v175, %v1721
    %1723 = vmatmul.f32.gmra.mxu0 %v230
    %v1724 = vpop.f32.mrf.mxu0
    %v1725 = vadd.f32 %v175, %v1724
    %1726 = vmatmul.f32.gmra.mxu0 %v233
    %v1727 = vpop.f32.mrf.mxu0
    %v1728 = vadd.f32 %v175, %v1727
    %1729 = vmatmul.f32.gmra.mxu0 %v236
    %v1730 = vpop.f32.mrf.mxu0
    %v1731 = vadd.f32 %v175, %v1730
    %1732 = vmatmul.f32.gmra.mxu0 %v239
    %v1733 = vpop.f32.mrf.mxu0
    %v1734 = vadd.f32 %v175, %v1733
    %1735 = vmatmul.f32.gmra.mxu0 %v242
    %v1736 = vpop.f32.mrf.mxu0
    %v1737 = vadd.f32 %v175, %v1736
    %1738 = vmatmul.f32.gmra.mxu0 %v245
    %v1739 = vpop.f32.mrf.mxu0
    %v1740 = vadd.f32 %v175, %v1739
    %1741 = vmatmul.f32.gmra.mxu0 %v248
    %v1742 = vpop.f32.mrf.mxu0
    %v1743 = vadd.f32 %v175, %v1742
    %1744 = vdwg.mxu0
    %1745 = vmatpush.msra.mxu0 0.0
    %1746 = vmatpush.msra.mxu0 0.0
    %1747 = vmatpush.msra.mxu0 0.0
    %1748 = vmatpush.msra.mxu0 0.0
    %1749 = vmatpush.msra.mxu0 0.0
    %1750 = vmatpush.msra.mxu0 0.0
    %1751 = vmatpush.msra.mxu0 0.0
    %1752 = vmatpush.msra.mxu0 0.0
    %1753 = vmatpush.msra.mxu0 0.0
    %1754 = vmatpush.msra.mxu0 0.0
    %1755 = vmatpush.msra.mxu0 0.0
    %1756 = vmatpush.msra.mxu0 0.0
    %1757 = vmatpush.msra.mxu0 %v146
    %1758 = vmatpush.msra.mxu0 %v122
    %1759 = vmatpush.msra.mxu0 %v98
    %1760 = vmatpush.msra.mxu0 %v74
    %1761 = vmatmul.f32.gmra.mxu0 %v203
    %v1762 = vpop.f32.mrf.mxu0
    %v1763 = vadd.f32 %v176, %v1762
    %1764 = vmatmul.f32.gmra.mxu0 %v206
    %v1765 = vpop.f32.mrf.mxu0
    %v1766 = vadd.f32 %v176, %v1765
    %1767 = vmatmul.f32.gmra.mxu0 %v209
    %v1768 = vpop.f32.mrf.mxu0
    %v1769 = vadd.f32 %v176, %v1768
    %1770 = vmatmul.f32.gmra.mxu0 %v212
    %v1771 = vpop.f32.mrf.mxu0
    %v1772 = vadd.f32 %v176, %v1771
    %1773 = vmatmul.f32.gmra.mxu0 %v215
    %v1774 = vpop.f32.mrf.mxu0
    %v1775 = vadd.f32 %v176, %v1774
    %1776 = vmatmul.f32.gmra.mxu0 %v218
    %v1777 = vpop.f32.mrf.mxu0
    %v1778 = vadd.f32 %v176, %v1777
    %1779 = vmatmul.f32.gmra.mxu0 %v221
    %v1780 = vpop.f32.mrf.mxu0
    %v1781 = vadd.f32 %v176, %v1780
    %1782 = vmatmul.f32.gmra.mxu0 %v224
    %v1783 = vpop.f32.mrf.mxu0
    %v1784 = vadd.f32 %v176, %v1783
    %1785 = vmatmul.f32.gmra.mxu0 %v227
    %v1786 = vpop.f32.mrf.mxu0
    %v1787 = vadd.f32 %v176, %v1786
    %1788 = vmatmul.f32.gmra.mxu0 %v230
    %v1789 = vpop.f32.mrf.mxu0
    %v1790 = vadd.f32 %v176, %v1789
    %1791 = vmatmul.f32.gmra.mxu0 %v233
    %v1792 = vpop.f32.mrf.mxu0
    %v1793 = vadd.f32 %v176, %v1792
    %1794 = vmatmul.f32.gmra.mxu0 %v236
    %v1795 = vpop.f32.mrf.mxu0
    %v1796 = vadd.f32 %v176, %v1795
    %1797 = vmatmul.f32.gmra.mxu0 %v239
    %v1798 = vpop.f32.mrf.mxu0
    %v1799 = vadd.f32 %v176, %v1798
    %1800 = vmatmul.f32.gmra.mxu0 %v242
    %v1801 = vpop.f32.mrf.mxu0
    %v1802 = vadd.f32 %v176, %v1801
    %1803 = vmatmul.f32.gmra.mxu0 %v245
    %v1804 = vpop.f32.mrf.mxu0
    %v1805 = vadd.f32 %v176, %v1804
    %1806 = vmatmul.f32.gmra.mxu0 %v248
    %v1807 = vpop.f32.mrf.mxu0
    %v1808 = vadd.f32 %v176, %v1807
    %1809 = vdwg.mxu0
    %1810 = vst [vmem:[#allocation5] sm:$0xff] %v268
    %1811 = vst [vmem:[#allocation5 + $0x8] sm:$0xff] %v271
    %1812 = vst [vmem:[#allocation5 + $0x10] sm:$0xff] %v274
    %1813 = vst [vmem:[#allocation5 + $0x18] sm:$0xff] %v277
    %1814 = vst [vmem:[#allocation5 + $0x20] sm:$0xff] %v280
    %1815 = vst [vmem:[#allocation5 + $0x28] sm:$0xff] %v283
    %1816 = vst [vmem:[#allocation5 + $0x30] sm:$0xff] %v286
    %1817 = vst [vmem:[#allocation5 + $0x38] sm:$0xff] %v289
    %1818 = vst [vmem:[#allocation5 + $0x40] sm:$0xff] %v292
    %1819 = vst [vmem:[#allocation5 + $0x48] sm:$0xff] %v295
    %1820 = vst [vmem:[#allocation5 + $0x50] sm:$0xff] %v298
    %1821 = vst [vmem:[#allocation5 + $0x58] sm:$0xff] %v301
    %1822 = vst [vmem:[#allocation5 + $0x60] sm:$0xff] %v304
    %1823 = vst [vmem:[#allocation5 + $0x68] sm:$0xff] %v307
    %1824 = vst [vmem:[#allocation5 + $0x70] sm:$0xff] %v310
    %1825 = vst [vmem:[#allocation5 + $0x78] sm:$0xff] %v313
    %s1826 = scalar_lea.vmem [#allocation5], 128
    %1827 = vst [vmem:[%s1826] sm:$0xff] %v333
    %1828 = vst [vmem:[%s1826 + $0x8] sm:$0xff] %v336
    %1829 = vst [vmem:[%s1826 + $0x10] sm:$0xff] %v339
    %1830 = vst [vmem:[%s1826 + $0x18] sm:$0xff] %v342
    %1831 = vst [vmem:[%s1826 + $0x20] sm:$0xff] %v345
    %1832 = vst [vmem:[%s1826 + $0x28] sm:$0xff] %v348
    %1833 = vst [vmem:[%s1826 + $0x30] sm:$0xff] %v351
    %1834 = vst [vmem:[%s1826 + $0x38] sm:$0xff] %v354
    %1835 = vst [vmem:[%s1826 + $0x40] sm:$0xff] %v357
    %1836 = vst [vmem:[%s1826 + $0x48] sm:$0xff] %v360
    %1837 = vst [vmem:[%s1826 + $0x50] sm:$0xff] %v363
    %1838 = vst [vmem:[%s1826 + $0x58] sm:$0xff] %v366
    %1839 = vst [vmem:[%s1826 + $0x60] sm:$0xff] %v369
    %1840 = vst [vmem:[%s1826 + $0x68] sm:$0xff] %v372
    %1841 = vst [vmem:[%s1826 + $0x70] sm:$0xff] %v375
    %1842 = vst [vmem:[%s1826 + $0x78] sm:$0xff] %v378
    %s1843 = scalar_lea.vmem [#allocation5], 256
    %1844 = vst [vmem:[%s1843] sm:$0xff] %v398
    %1845 = vst [vmem:[%s1843 + $0x8] sm:$0xff] %v401
    %1846 = vst [vmem:[%s1843 + $0x10] sm:$0xff] %v404
    %1847 = vst [vmem:[%s1843 + $0x18] sm:$0xff] %v407
    %1848 = vst [vmem:[%s1843 + $0x20] sm:$0xff] %v410
    %1849 = vst [vmem:[%s1843 + $0x28] sm:$0xff] %v413
    %1850 = vst [vmem:[%s1843 + $0x30] sm:$0xff] %v416
    %1851 = vst [vmem:[%s1843 + $0x38] sm:$0xff] %v419
    %1852 = vst [vmem:[%s1843 + $0x40] sm:$0xff] %v422
    %1853 = vst [vmem:[%s1843 + $0x48] sm:$0xff] %v425
    %1854 = vst [vmem:[%s1843 + $0x50] sm:$0xff] %v428
    %1855 = vst [vmem:[%s1843 + $0x58] sm:$0xff] %v431
    %1856 = vst [vmem:[%s1843 + $0x60] sm:$0xff] %v434
    %1857 = vst [vmem:[%s1843 + $0x68] sm:$0xff] %v437
    %1858 = vst [vmem:[%s1843 + $0x70] sm:$0xff] %v440
    %1859 = vst [vmem:[%s1843 + $0x78] sm:$0xff] %v443
    %s1860 = scalar_lea.vmem [#allocation5], 384
    %1861 = vst [vmem:[%s1860] sm:$0xff] %v463
    %1862 = vst [vmem:[%s1860 + $0x8] sm:$0xff] %v466
    %1863 = vst [vmem:[%s1860 + $0x10] sm:$0xff] %v469
    %1864 = vst [vmem:[%s1860 + $0x18] sm:$0xff] %v472
    %1865 = vst [vmem:[%s1860 + $0x20] sm:$0xff] %v475
    %1866 = vst [vmem:[%s1860 + $0x28] sm:$0xff] %v478
    %1867 = vst [vmem:[%s1860 + $0x30] sm:$0xff] %v481
    %1868 = vst [vmem:[%s1860 + $0x38] sm:$0xff] %v484
    %1869 = vst [vmem:[%s1860 + $0x40] sm:$0xff] %v487
    %1870 = vst [vmem:[%s1860 + $0x48] sm:$0xff] %v490
    %1871 = vst [vmem:[%s1860 + $0x50] sm:$0xff] %v493
    %1872 = vst [vmem:[%s1860 + $0x58] sm:$0xff] %v496
    %1873 = vst [vmem:[%s1860 + $0x60] sm:$0xff] %v499
    %1874 = vst [vmem:[%s1860 + $0x68] sm:$0xff] %v502
    %1875 = vst [vmem:[%s1860 + $0x70] sm:$0xff] %v505
    %1876 = vst [vmem:[%s1860 + $0x78] sm:$0xff] %v508
    %s1877 = scalar_lea.vmem [#allocation5], 512
    %1878 = vst [vmem:[%s1877] sm:$0xff] %v528
    %1879 = vst [vmem:[%s1877 + $0x8] sm:$0xff] %v531
    %1880 = vst [vmem:[%s1877 + $0x10] sm:$0xff] %v534
    %1881 = vst [vmem:[%s1877 + $0x18] sm:$0xff] %v537
    %1882 = vst [vmem:[%s1877 + $0x20] sm:$0xff] %v540
    %1883 = vst [vmem:[%s1877 + $0x28] sm:$0xff] %v543
    %1884 = vst [vmem:[%s1877 + $0x30] sm:$0xff] %v546
    %1885 = vst [vmem:[%s1877 + $0x38] sm:$0xff] %v549
    %1886 = vst [vmem:[%s1877 + $0x40] sm:$0xff] %v552
    %1887 = vst [vmem:[%s1877 + $0x48] sm:$0xff] %v555
    %1888 = vst [vmem:[%s1877 + $0x50] sm:$0xff] %v558
    %1889 = vst [vmem:[%s1877 + $0x58] sm:$0xff] %v561
    %1890 = vst [vmem:[%s1877 + $0x60] sm:$0xff] %v564
    %1891 = vst [vmem:[%s1877 + $0x68] sm:$0xff] %v567
    %1892 = vst [vmem:[%s1877 + $0x70] sm:$0xff] %v570
    %1893 = vst [vmem:[%s1877 + $0x78] sm:$0xff] %v573
    %s1894 = scalar_lea.vmem [#allocation5], 640
    %1895 = vst [vmem:[%s1894] sm:$0xff] %v593
    %1896 = vst [vmem:[%s1894 + $0x8] sm:$0xff] %v596
    %1897 = vst [vmem:[%s1894 + $0x10] sm:$0xff] %v599
    %1898 = vst [vmem:[%s1894 + $0x18] sm:$0xff] %v602
    %1899 = vst [vmem:[%s1894 + $0x20] sm:$0xff] %v605
    %1900 = vst [vmem:[%s1894 + $0x28] sm:$0xff] %v608
    %1901 = vst [vmem:[%s1894 + $0x30] sm:$0xff] %v611
    %1902 = vst [vmem:[%s1894 + $0x38] sm:$0xff] %v614
    %1903 = vst [vmem:[%s1894 + $0x40] sm:$0xff] %v617
    %1904 = vst [vmem:[%s1894 + $0x48] sm:$0xff] %v620
    %1905 = vst [vmem:[%s1894 + $0x50] sm:$0xff] %v623
    %1906 = vst [vmem:[%s1894 + $0x58] sm:$0xff] %v626
    %1907 = vst [vmem:[%s1894 + $0x60] sm:$0xff] %v629
    %1908 = vst [vmem:[%s1894 + $0x68] sm:$0xff] %v632
    %1909 = vst [vmem:[%s1894 + $0x70] sm:$0xff] %v635
    %1910 = vst [vmem:[%s1894 + $0x78] sm:$0xff] %v638
    %s1911 = scalar_lea.vmem [#allocation5], 768
    %1912 = vst [vmem:[%s1911] sm:$0xff] %v658
    %1913 = vst [vmem:[%s1911 + $0x8] sm:$0xff] %v661
    %1914 = vst [vmem:[%s1911 + $0x10] sm:$0xff] %v664
    %1915 = vst [vmem:[%s1911 + $0x18] sm:$0xff] %v667
    %1916 = vst [vmem:[%s1911 + $0x20] sm:$0xff] %v670
    %1917 = vst [vmem:[%s1911 + $0x28] sm:$0xff] %v673
    %1918 = vst [vmem:[%s1911 + $0x30] sm:$0xff] %v676
    %1919 = vst [vmem:[%s1911 + $0x38] sm:$0xff] %v679
    %1920 = vst [vmem:[%s1911 + $0x40] sm:$0xff] %v682
    %1921 = vst [vmem:[%s1911 + $0x48] sm:$0xff] %v685
    %1922 = vst [vmem:[%s1911 + $0x50] sm:$0xff] %v688
    %1923 = vst [vmem:[%s1911 + $0x58] sm:$0xff] %v691
    %1924 = vst [vmem:[%s1911 + $0x60] sm:$0xff] %v694
    %1925 = vst [vmem:[%s1911 + $0x68] sm:$0xff] %v697
    %1926 = vst [vmem:[%s1911 + $0x70] sm:$0xff] %v700
    %1927 = vst [vmem:[%s1911 + $0x78] sm:$0xff] %v703
    %s1928 = scalar_lea.vmem [#allocation5], 896
    %1929 = vst [vmem:[%s1928] sm:$0xff] %v723
    %1930 = vst [vmem:[%s1928 + $0x8] sm:$0xff] %v726
    %1931 = vst [vmem:[%s1928 + $0x10] sm:$0xff] %v729
    %1932 = vst [vmem:[%s1928 + $0x18] sm:$0xff] %v732
    %1933 = vst [vmem:[%s1928 + $0x20] sm:$0xff] %v735
    %1934 = vst [vmem:[%s1928 + $0x28] sm:$0xff] %v738
    %1935 = vst [vmem:[%s1928 + $0x30] sm:$0xff] %v741
    %1936 = vst [vmem:[%s1928 + $0x38] sm:$0xff] %v744
    %1937 = vst [vmem:[%s1928 + $0x40] sm:$0xff] %v747
    %1938 = vst [vmem:[%s1928 + $0x48] sm:$0xff] %v750
    %1939 = vst [vmem:[%s1928 + $0x50] sm:$0xff] %v753
    %1940 = vst [vmem:[%s1928 + $0x58] sm:$0xff] %v756
    %1941 = vst [vmem:[%s1928 + $0x60] sm:$0xff] %v759
    %1942 = vst [vmem:[%s1928 + $0x68] sm:$0xff] %v762
    %1943 = vst [vmem:[%s1928 + $0x70] sm:$0xff] %v765
    %1944 = vst [vmem:[%s1928 + $0x78] sm:$0xff] %v768
    %1945 = vst [vmem:[#allocation6] sm:$0xff] %v788
    %1946 = vst [vmem:[#allocation6 + $0x8] sm:$0xff] %v791
    %1947 = vst [vmem:[#allocation6 + $0x10] sm:$0xff] %v794
    %1948 = vst [vmem:[#allocation6 + $0x18] sm:$0xff] %v797
    %1949 = vst [vmem:[#allocation6 + $0x20] sm:$0xff] %v800
    %1950 = vst [vmem:[#allocation6 + $0x28] sm:$0xff] %v803
    %1951 = vst [vmem:[#allocation6 + $0x30] sm:$0xff] %v806
    %1952 = vst [vmem:[#allocation6 + $0x38] sm:$0xff] %v809
    %1953 = vst [vmem:[#allocation6 + $0x40] sm:$0xff] %v812
    %1954 = vst [vmem:[#allocation6 + $0x48] sm:$0xff] %v815
    %1955 = vst [vmem:[#allocation6 + $0x50] sm:$0xff] %v818
    %1956 = vst [vmem:[#allocation6 + $0x58] sm:$0xff] %v821
    %1957 = vst [vmem:[#allocation6 + $0x60] sm:$0xff] %v824
    %1958 = vst [vmem:[#allocation6 + $0x68] sm:$0xff] %v827
    %1959 = vst [vmem:[#allocation6 + $0x70] sm:$0xff] %v830
    %1960 = vst [vmem:[#allocation6 + $0x78] sm:$0xff] %v833
    %s1961 = scalar_lea.vmem [#allocation6], 128
    %1962 = vst [vmem:[%s1961] sm:$0xff] %v853
    %1963 = vst [vmem:[%s1961 + $0x8] sm:$0xff] %v856
    %1964 = vst [vmem:[%s1961 + $0x10] sm:$0xff] %v859
    %1965 = vst [vmem:[%s1961 + $0x18] sm:$0xff] %v862
    %1966 = vst [vmem:[%s1961 + $0x20] sm:$0xff] %v865
    %1967 = vst [vmem:[%s1961 + $0x28] sm:$0xff] %v868
    %1968 = vst [vmem:[%s1961 + $0x30] sm:$0xff] %v871
    %1969 = vst [vmem:[%s1961 + $0x38] sm:$0xff] %v874
    %1970 = vst [vmem:[%s1961 + $0x40] sm:$0xff] %v877
    %1971 = vst [vmem:[%s1961 + $0x48] sm:$0xff] %v880
    %1972 = vst [vmem:[%s1961 + $0x50] sm:$0xff] %v883
    %1973 = vst [vmem:[%s1961 + $0x58] sm:$0xff] %v886
    %1974 = vst [vmem:[%s1961 + $0x60] sm:$0xff] %v889
    %1975 = vst [vmem:[%s1961 + $0x68] sm:$0xff] %v892
    %1976 = vst [vmem:[%s1961 + $0x70] sm:$0xff] %v895
    %1977 = vst [vmem:[%s1961 + $0x78] sm:$0xff] %v898
    %s1978 = scalar_lea.vmem [#allocation6], 256
    %1979 = vst [vmem:[%s1978] sm:$0xff] %v918
    %1980 = vst [vmem:[%s1978 + $0x8] sm:$0xff] %v921
    %1981 = vst [vmem:[%s1978 + $0x10] sm:$0xff] %v924
    %1982 = vst [vmem:[%s1978 + $0x18] sm:$0xff] %v927
    %1983 = vst [vmem:[%s1978 + $0x20] sm:$0xff] %v930
    %1984 = vst [vmem:[%s1978 + $0x28] sm:$0xff] %v933
    %1985 = vst [vmem:[%s1978 + $0x30] sm:$0xff] %v936
    %1986 = vst [vmem:[%s1978 + $0x38] sm:$0xff] %v939
    %1987 = vst [vmem:[%s1978 + $0x40] sm:$0xff] %v942
    %1988 = vst [vmem:[%s1978 + $0x48] sm:$0xff] %v945
    %1989 = vst [vmem:[%s1978 + $0x50] sm:$0xff] %v948
    %1990 = vst [vmem:[%s1978 + $0x58] sm:$0xff] %v951
    %1991 = vst [vmem:[%s1978 + $0x60] sm:$0xff] %v954
    %1992 = vst [vmem:[%s1978 + $0x68] sm:$0xff] %v957
    %1993 = vst [vmem:[%s1978 + $0x70] sm:$0xff] %v960
    %1994 = vst [vmem:[%s1978 + $0x78] sm:$0xff] %v963
    %s1995 = scalar_lea.vmem [#allocation6], 384
    %1996 = vst [vmem:[%s1995] sm:$0xff] %v983
    %1997 = vst [vmem:[%s1995 + $0x8] sm:$0xff] %v986
    %1998 = vst [vmem:[%s1995 + $0x10] sm:$0xff] %v989
    %1999 = vst [vmem:[%s1995 + $0x18] sm:$0xff] %v992
    %2000 = vst [vmem:[%s1995 + $0x20] sm:$0xff] %v995
    %2001 = vst [vmem:[%s1995 + $0x28] sm:$0xff] %v998
    %2002 = vst [vmem:[%s1995 + $0x30] sm:$0xff] %v1001
    %2003 = vst [vmem:[%s1995 + $0x38] sm:$0xff] %v1004
    %2004 = vst [vmem:[%s1995 + $0x40] sm:$0xff] %v1007
    %2005 = vst [vmem:[%s1995 + $0x48] sm:$0xff] %v1010
    %2006 = vst [vmem:[%s1995 + $0x50] sm:$0xff] %v1013
    %2007 = vst [vmem:[%s1995 + $0x58] sm:$0xff] %v1016
    %2008 = vst [vmem:[%s1995 + $0x60] sm:$0xff] %v1019
    %2009 = vst [vmem:[%s1995 + $0x68] sm:$0xff] %v1022
    %2010 = vst [vmem:[%s1995 + $0x70] sm:$0xff] %v1025
    %2011 = vst [vmem:[%s1995 + $0x78] sm:$0xff] %v1028
    %s2012 = scalar_lea.vmem [#allocation6], 512
    %2013 = vst [vmem:[%s2012] sm:$0xff] %v1048
    %2014 = vst [vmem:[%s2012 + $0x8] sm:$0xff] %v1051
    %2015 = vst [vmem:[%s2012 + $0x10] sm:$0xff] %v1054
    %2016 = vst [vmem:[%s2012 + $0x18] sm:$0xff] %v1057
    %2017 = vst [vmem:[%s2012 + $0x20] sm:$0xff] %v1060
    %2018 = vst [vmem:[%s2012 + $0x28] sm:$0xff] %v1063
    %2019 = vst [vmem:[%s2012 + $0x30] sm:$0xff] %v1066
    %2020 = vst [vmem:[%s2012 + $0x38] sm:$0xff] %v1069
    %2021 = vst [vmem:[%s2012 + $0x40] sm:$0xff] %v1072
    %2022 = vst [vmem:[%s2012 + $0x48] sm:$0xff] %v1075
    %2023 = vst [vmem:[%s2012 + $0x50] sm:$0xff] %v1078
    %2024 = vst [vmem:[%s2012 + $0x58] sm:$0xff] %v1081
    %2025 = vst [vmem:[%s2012 + $0x60] sm:$0xff] %v1084
    %2026 = vst [vmem:[%s2012 + $0x68] sm:$0xff] %v1087
    %2027 = vst [vmem:[%s2012 + $0x70] sm:$0xff] %v1090
    %2028 = vst [vmem:[%s2012 + $0x78] sm:$0xff] %v1093
    %s2029 = scalar_lea.vmem [#allocation6], 640
    %2030 = vst [vmem:[%s2029] sm:$0xff] %v1113
    %2031 = vst [vmem:[%s2029 + $0x8] sm:$0xff] %v1116
    %2032 = vst [vmem:[%s2029 + $0x10] sm:$0xff] %v1119
    %2033 = vst [vmem:[%s2029 + $0x18] sm:$0xff] %v1122
    %2034 = vst [vmem:[%s2029 + $0x20] sm:$0xff] %v1125
    %2035 = vst [vmem:[%s2029 + $0x28] sm:$0xff] %v1128
    %2036 = vst [vmem:[%s2029 + $0x30] sm:$0xff] %v1131
    %2037 = vst [vmem:[%s2029 + $0x38] sm:$0xff] %v1134
    %2038 = vst [vmem:[%s2029 + $0x40] sm:$0xff] %v1137
    %2039 = vst [vmem:[%s2029 + $0x48] sm:$0xff] %v1140
    %2040 = vst [vmem:[%s2029 + $0x50] sm:$0xff] %v1143
    %2041 = vst [vmem:[%s2029 + $0x58] sm:$0xff] %v1146
    %2042 = vst [vmem:[%s2029 + $0x60] sm:$0xff] %v1149
    %2043 = vst [vmem:[%s2029 + $0x68] sm:$0xff] %v1152
    %2044 = vst [vmem:[%s2029 + $0x70] sm:$0xff] %v1155
    %2045 = vst [vmem:[%s2029 + $0x78] sm:$0xff] %v1158
    %s2046 = scalar_lea.vmem [#allocation6], 768
    %2047 = vst [vmem:[%s2046] sm:$0xff] %v1178
    %2048 = vst [vmem:[%s2046 + $0x8] sm:$0xff] %v1181
    %2049 = vst [vmem:[%s2046 + $0x10] sm:$0xff] %v1184
    %2050 = vst [vmem:[%s2046 + $0x18] sm:$0xff] %v1187
    %2051 = vst [vmem:[%s2046 + $0x20] sm:$0xff] %v1190
    %2052 = vst [vmem:[%s2046 + $0x28] sm:$0xff] %v1193
    %2053 = vst [vmem:[%s2046 + $0x30] sm:$0xff] %v1196
    %2054 = vst [vmem:[%s2046 + $0x38] sm:$0xff] %v1199
    %2055 = vst [vmem:[%s2046 + $0x40] sm:$0xff] %v1202
    %2056 = vst [vmem:[%s2046 + $0x48] sm:$0xff] %v1205
    %2057 = vst [vmem:[%s2046 + $0x50] sm:$0xff] %v1208
    %2058 = vst [vmem:[%s2046 + $0x58] sm:$0xff] %v1211
    %2059 = vst [vmem:[%s2046 + $0x60] sm:$0xff] %v1214
    %2060 = vst [vmem:[%s2046 + $0x68] sm:$0xff] %v1217
    %2061 = vst [vmem:[%s2046 + $0x70] sm:$0xff] %v1220
    %2062 = vst [vmem:[%s2046 + $0x78] sm:$0xff] %v1223
    %s2063 = scalar_lea.vmem [#allocation6], 896
    %2064 = vst [vmem:[%s2063] sm:$0xff] %v1243
    %2065 = vst [vmem:[%s2063 + $0x8] sm:$0xff] %v1246
    %2066 = vst [vmem:[%s2063 + $0x10] sm:$0xff] %v1249
    %2067 = vst [vmem:[%s2063 + $0x18] sm:$0xff] %v1252
    %2068 = vst [vmem:[%s2063 + $0x20] sm:$0xff] %v1255
    %2069 = vst [vmem:[%s2063 + $0x28] sm:$0xff] %v1258
    %2070 = vst [vmem:[%s2063 + $0x30] sm:$0xff] %v1261
    %2071 = vst [vmem:[%s2063 + $0x38] sm:$0xff] %v1264
    %2072 = vst [vmem:[%s2063 + $0x40] sm:$0xff] %v1267
    %2073 = vst [vmem:[%s2063 + $0x48] sm:$0xff] %v1270
    %2074 = vst [vmem:[%s2063 + $0x50] sm:$0xff] %v1273
    %2075 = vst [vmem:[%s2063 + $0x58] sm:$0xff] %v1276
    %2076 = vst [vmem:[%s2063 + $0x60] sm:$0xff] %v1279
    %2077 = vst [vmem:[%s2063 + $0x68] sm:$0xff] %v1282
    %2078 = vst [vmem:[%s2063 + $0x70] sm:$0xff] %v1285
    %2079 = vst [vmem:[%s2063 + $0x78] sm:$0xff] %v1288
    %2080 = vst [vmem:[#allocation8] sm:$0xff] %v1308
    %2081 = vst [vmem:[#allocation8 + $0x8] sm:$0xff] %v1311
    %2082 = vst [vmem:[#allocation8 + $0x10] sm:$0xff] %v1314
    %2083 = vst [vmem:[#allocation8 + $0x18] sm:$0xff] %v1317
    %2084 = vst [vmem:[#allocation8 + $0x20] sm:$0xff] %v1320
    %2085 = vst [vmem:[#allocation8 + $0x28] sm:$0xff] %v1323
    %2086 = vst [vmem:[#allocation8 + $0x30] sm:$0xff] %v1326
    %2087 = vst [vmem:[#allocation8 + $0x38] sm:$0xff] %v1329
    %2088 = vst [vmem:[#allocation8 + $0x40] sm:$0xff] %v1332
    %2089 = vst [vmem:[#allocation8 + $0x48] sm:$0xff] %v1335
    %2090 = vst [vmem:[#allocation8 + $0x50] sm:$0xff] %v1338
    %2091 = vst [vmem:[#allocation8 + $0x58] sm:$0xff] %v1341
    %2092 = vst [vmem:[#allocation8 + $0x60] sm:$0xff] %v1344
    %2093 = vst [vmem:[#allocation8 + $0x68] sm:$0xff] %v1347
    %2094 = vst [vmem:[#allocation8 + $0x70] sm:$0xff] %v1350
    %2095 = vst [vmem:[#allocation8 + $0x78] sm:$0xff] %v1353
    %s2096 = scalar_lea.vmem [#allocation8], 128
    %2097 = vst [vmem:[%s2096] sm:$0xff] %v1373
    %2098 = vst [vmem:[%s2096 + $0x8] sm:$0xff] %v1376
    %2099 = vst [vmem:[%s2096 + $0x10] sm:$0xff] %v1379
    %2100 = vst [vmem:[%s2096 + $0x18] sm:$0xff] %v1382
    %2101 = vst [vmem:[%s2096 + $0x20] sm:$0xff] %v1385
    %2102 = vst [vmem:[%s2096 + $0x28] sm:$0xff] %v1388
    %2103 = vst [vmem:[%s2096 + $0x30] sm:$0xff] %v1391
    %2104 = vst [vmem:[%s2096 + $0x38] sm:$0xff] %v1394
    %2105 = vst [vmem:[%s2096 + $0x40] sm:$0xff] %v1397
    %2106 = vst [vmem:[%s2096 + $0x48] sm:$0xff] %v1400
    %2107 = vst [vmem:[%s2096 + $0x50] sm:$0xff] %v1403
    %2108 = vst [vmem:[%s2096 + $0x58] sm:$0xff] %v1406
    %2109 = vst [vmem:[%s2096 + $0x60] sm:$0xff] %v1409
    %2110 = vst [vmem:[%s2096 + $0x68] sm:$0xff] %v1412
    %2111 = vst [vmem:[%s2096 + $0x70] sm:$0xff] %v1415
    %2112 = vst [vmem:[%s2096 + $0x78] sm:$0xff] %v1418
    %s2113 = scalar_lea.vmem [#allocation8], 256
    %2114 = vst [vmem:[%s2113] sm:$0xff] %v1438
    %2115 = vst [vmem:[%s2113 + $0x8] sm:$0xff] %v1441
    %2116 = vst [vmem:[%s2113 + $0x10] sm:$0xff] %v1444
    %2117 = vst [vmem:[%s2113 + $0x18] sm:$0xff] %v1447
    %2118 = vst [vmem:[%s2113 + $0x20] sm:$0xff] %v1450
    %2119 = vst [vmem:[%s2113 + $0x28] sm:$0xff] %v1453
    %2120 = vst [vmem:[%s2113 + $0x30] sm:$0xff] %v1456
    %2121 = vst [vmem:[%s2113 + $0x38] sm:$0xff] %v1459
    %2122 = vst [vmem:[%s2113 + $0x40] sm:$0xff] %v1462
    %2123 = vst [vmem:[%s2113 + $0x48] sm:$0xff] %v1465
    %2124 = vst [vmem:[%s2113 + $0x50] sm:$0xff] %v1468
    %2125 = vst [vmem:[%s2113 + $0x58] sm:$0xff] %v1471
    %2126 = vst [vmem:[%s2113 + $0x60] sm:$0xff] %v1474
    %2127 = vst [vmem:[%s2113 + $0x68] sm:$0xff] %v1477
    %2128 = vst [vmem:[%s2113 + $0x70] sm:$0xff] %v1480
    %2129 = vst [vmem:[%s2113 + $0x78] sm:$0xff] %v1483
    %s2130 = scalar_lea.vmem [#allocation8], 384
    %2131 = vst [vmem:[%s2130] sm:$0xff] %v1503
    %2132 = vst [vmem:[%s2130 + $0x8] sm:$0xff] %v1506
    %2133 = vst [vmem:[%s2130 + $0x10] sm:$0xff] %v1509
    %2134 = vst [vmem:[%s2130 + $0x18] sm:$0xff] %v1512
    %2135 = vst [vmem:[%s2130 + $0x20] sm:$0xff] %v1515
    %2136 = vst [vmem:[%s2130 + $0x28] sm:$0xff] %v1518
    %2137 = vst [vmem:[%s2130 + $0x30] sm:$0xff] %v1521
    %2138 = vst [vmem:[%s2130 + $0x38] sm:$0xff] %v1524
    %2139 = vst [vmem:[%s2130 + $0x40] sm:$0xff] %v1527
    %2140 = vst [vmem:[%s2130 + $0x48] sm:$0xff] %v1530
    %2141 = vst [vmem:[%s2130 + $0x50] sm:$0xff] %v1533
    %2142 = vst [vmem:[%s2130 + $0x58] sm:$0xff] %v1536
    %2143 = vst [vmem:[%s2130 + $0x60] sm:$0xff] %v1539
    %2144 = vst [vmem:[%s2130 + $0x68] sm:$0xff] %v1542
    %2145 = vst [vmem:[%s2130 + $0x70] sm:$0xff] %v1545
    %2146 = vst [vmem:[%s2130 + $0x78] sm:$0xff] %v1548
    %s2147 = scalar_lea.vmem [#allocation8], 512
    %2148 = vst [vmem:[%s2147] sm:$0xff] %v1568
    %2149 = vst [vmem:[%s2147 + $0x8] sm:$0xff] %v1571
    %2150 = vst [vmem:[%s2147 + $0x10] sm:$0xff] %v1574
    %2151 = vst [vmem:[%s2147 + $0x18] sm:$0xff] %v1577
    %2152 = vst [vmem:[%s2147 + $0x20] sm:$0xff] %v1580
    %2153 = vst [vmem:[%s2147 + $0x28] sm:$0xff] %v1583
    %2154 = vst [vmem:[%s2147 + $0x30] sm:$0xff] %v1586
    %2155 = vst [vmem:[%s2147 + $0x38] sm:$0xff] %v1589
    %2156 = vst [vmem:[%s2147 + $0x40] sm:$0xff] %v1592
    %2157 = vst [vmem:[%s2147 + $0x48] sm:$0xff] %v1595
    %2158 = vst [vmem:[%s2147 + $0x50] sm:$0xff] %v1598
    %2159 = vst [vmem:[%s2147 + $0x58] sm:$0xff] %v1601
    %2160 = vst [vmem:[%s2147 + $0x60] sm:$0xff] %v1604
    %2161 = vst [vmem:[%s2147 + $0x68] sm:$0xff] %v1607
    %2162 = vst [vmem:[%s2147 + $0x70] sm:$0xff] %v1610
    %2163 = vst [vmem:[%s2147 + $0x78] sm:$0xff] %v1613
    %s2164 = scalar_lea.vmem [#allocation8], 640
    %2165 = vst [vmem:[%s2164] sm:$0xff] %v1633
    %2166 = vst [vmem:[%s2164 + $0x8] sm:$0xff] %v1636
    %2167 = vst [vmem:[%s2164 + $0x10] sm:$0xff] %v1639
    %2168 = vst [vmem:[%s2164 + $0x18] sm:$0xff] %v1642
    %2169 = vst [vmem:[%s2164 + $0x20] sm:$0xff] %v1645
    %2170 = vst [vmem:[%s2164 + $0x28] sm:$0xff] %v1648
    %2171 = vst [vmem:[%s2164 + $0x30] sm:$0xff] %v1651
    %2172 = vst [vmem:[%s2164 + $0x38] sm:$0xff] %v1654
    %2173 = vst [vmem:[%s2164 + $0x40] sm:$0xff] %v1657
    %2174 = vst [vmem:[%s2164 + $0x48] sm:$0xff] %v1660
    %2175 = vst [vmem:[%s2164 + $0x50] sm:$0xff] %v1663
    %2176 = vst [vmem:[%s2164 + $0x58] sm:$0xff] %v1666
    %2177 = vst [vmem:[%s2164 + $0x60] sm:$0xff] %v1669
    %2178 = vst [vmem:[%s2164 + $0x68] sm:$0xff] %v1672
    %2179 = vst [vmem:[%s2164 + $0x70] sm:$0xff] %v1675
    %2180 = vst [vmem:[%s2164 + $0x78] sm:$0xff] %v1678
    %s2181 = scalar_lea.vmem [#allocation8], 768
    %2182 = vst [vmem:[%s2181] sm:$0xff] %v1698
    %2183 = vst [vmem:[%s2181 + $0x8] sm:$0xff] %v1701
    %2184 = vst [vmem:[%s2181 + $0x10] sm:$0xff] %v1704
    %2185 = vst [vmem:[%s2181 + $0x18] sm:$0xff] %v1707
    %2186 = vst [vmem:[%s2181 + $0x20] sm:$0xff] %v1710
    %2187 = vst [vmem:[%s2181 + $0x28] sm:$0xff] %v1713
    %2188 = vst [vmem:[%s2181 + $0x30] sm:$0xff] %v1716
    %2189 = vst [vmem:[%s2181 + $0x38] sm:$0xff] %v1719
    %2190 = vst [vmem:[%s2181 + $0x40] sm:$0xff] %v1722
    %2191 = vst [vmem:[%s2181 + $0x48] sm:$0xff] %v1725
    %2192 = vst [vmem:[%s2181 + $0x50] sm:$0xff] %v1728
    %2193 = vst [vmem:[%s2181 + $0x58] sm:$0xff] %v1731
    %2194 = vst [vmem:[%s2181 + $0x60] sm:$0xff] %v1734
    %2195 = vst [vmem:[%s2181 + $0x68] sm:$0xff] %v1737
    %2196 = vst [vmem:[%s2181 + $0x70] sm:$0xff] %v1740
    %2197 = vst [vmem:[%s2181 + $0x78] sm:$0xff] %v1743
    %s2198 = scalar_lea.vmem [#allocation8], 896
    %2199 = vst [vmem:[%s2198] sm:$0xff] %v1763
    %2200 = vst [vmem:[%s2198 + $0x8] sm:$0xff] %v1766
    %2201 = vst [vmem:[%s2198 + $0x10] sm:$0xff] %v1769
    %2202 = vst [vmem:[%s2198 + $0x18] sm:$0xff] %v1772
    %2203 = vst [vmem:[%s2198 + $0x20] sm:$0xff] %v1775
    %2204 = vst [vmem:[%s2198 + $0x28] sm:$0xff] %v1778
    %2205 = vst [vmem:[%s2198 + $0x30] sm:$0xff] %v1781
    %2206 = vst [vmem:[%s2198 + $0x38] sm:$0xff] %v1784
    %2207 = vst [vmem:[%s2198 + $0x40] sm:$0xff] %v1787
    %2208 = vst [vmem:[%s2198 + $0x48] sm:$0xff] %v1790
    %2209 = vst [vmem:[%s2198 + $0x50] sm:$0xff] %v1793
    %2210 = vst [vmem:[%s2198 + $0x58] sm:$0xff] %v1796
    %2211 = vst [vmem:[%s2198 + $0x60] sm:$0xff] %v1799
    %2212 = vst [vmem:[%s2198 + $0x68] sm:$0xff] %v1802
    %2213 = vst [vmem:[%s2198 + $0x70] sm:$0xff] %v1805
    %2214 = vst [vmem:[%s2198 + $0x78] sm:$0xff] %v1808
    // Predicated region
    $region18: #{tpu_custom_call.1} parent=1 // pred_check
      _
    $region19: #{tpu_custom_call.1} parent=1 // pred_check_branch
      %2216 = sbr.rel (0) target = $region21
    $region20: #{tpu_custom_call.1} parent=1 // pred_region
      %2218 = vsyncadd [#allocation4], 0
      %s2219 = sshll.u32 [#allocation5], 4
      %s2220 = int_to_ptr.vmem [resolvable:$true] %s2219
      %s2221 = sshll.u32 %s3, 4
      %s2222 = int_to_ptr.hbm [resolvable:$true] %s2221
      %2227 = dma.vmem_to_hbm [thread:$0]  %s2220, 16384, %s2222, [#allocation4], 128, 128, 8
    $region21: #{tpu_custom_call.1} parent=1 // pred_fallthru
      _
    // Predicated region
    $region22: #{tpu_custom_call.1} parent=1 // pred_check
      _
    $region23: #{tpu_custom_call.1} parent=1 // pred_check_branch
      %2229 = sbr.rel (0) target = $region25
    $region24: #{tpu_custom_call.1} parent=1 // pred_region
      %2231 = vsyncadd [#allocation7], 0
      %s2232 = sshll.u32 [#allocation6], 4
      %s2233 = int_to_ptr.vmem [resolvable:$true] %s2232
      %s2234 = sshll.u32 %s4, 4
      %s2235 = int_to_ptr.hbm [resolvable:$true] %s2234
      %2240 = dma.vmem_to_hbm [thread:$0]  %s2233, 16384, %s2235, [#allocation7], 128, 128, 8
    $region25: #{tpu_custom_call.1} parent=1 // pred_fallthru
      _
    // Predicated region
    $region26: #{tpu_custom_call.1} parent=1 // pred_check
      _
    $region27: #{tpu_custom_call.1} parent=1 // pred_check_branch
      %2242 = sbr.rel (0) target = $region29
    $region28: #{tpu_custom_call.1} parent=1 // pred_region
      %2244 = vsyncadd [#allocation7], 0
      %s2245 = sshll.u32 [#allocation8], 4
      %s2246 = int_to_ptr.vmem [resolvable:$true] %s2245
      %s2247 = sshll.u32 %s5, 4
      %s2248 = int_to_ptr.hbm [resolvable:$true] %s2247
      %2253 = dma.vmem_to_hbm [thread:$0]  %s2246, 16384, %s2248, [#allocation7], 128, 128, 8
    $region29: #{tpu_custom_call.1} parent=1 // pred_fallthru
      _
    // Predicated region
    $region30: #{tpu_custom_call.1} parent=1 // pred_check
      _
    $region31: #{tpu_custom_call.1} parent=1 // pred_check_branch
      %2255 = sbr.rel (0) target = $region33
    $region32: #{tpu_custom_call.1} parent=1 // pred_region
      %2257 = dma.done [#allocation4], 16384
    $region33: #{tpu_custom_call.1} parent=1 // pred_fallthru
      _
    // Predicated region
    $region34: #{tpu_custom_call.1} parent=1 // pred_check
      _
    $region35: #{tpu_custom_call.1} parent=1 // pred_check_branch
      %2259 = sbr.rel (0) target = $region37
    $region36: #{tpu_custom_call.1} parent=1 // pred_region
      %2261 = dma.done [#allocation7], 16384
    $region37: #{tpu_custom_call.1} parent=1 // pred_fallthru
      _
    // Predicated region
    $region38: #{tpu_custom_call.1} parent=1 // pred_check
      _
    $region39: #{tpu_custom_call.1} parent=1 // pred_check_branch
      %2263 = sbr.rel (0) target = $region41
    $region40: #{tpu_custom_call.1} parent=1 // pred_region
      %2265 = dma.done [#allocation7], 16384
    $region41: #{tpu_custom_call.1} parent=1 // pred_fallthru
      _
    %2266 = vsyncpa [#allocation3], 1
    %2267 = vsyncpa [#allocation4], 1
    %2268 = vsyncpa [#allocation7], 1

</llo_original>
